<compile_context>
chip_gen: v6e
topology: v6e:2x2x1
jax: 0.10.0
libtpu: 0.0.40
codegen_flags: <defaults>
</compile_context>

<pallas_src>
import math
import numpy as np
import jax
import jax.numpy as jnp
from jax.experimental import pallas as pl
from jax.experimental.pallas import tpu as pltpu

CONNECTIONS = {10: [9], 9: [8, 10], 8: [7, 9], 14: [15, 8], 15: [16, 14],
               11: [12, 8], 12: [13, 11], 7: [0, 8], 0: [1, 7], 1: [2, 0],
               2: [3, 1], 4: [5, 0], 5: [6, 4], 16: [15], 13: [12],
               3: [2], 6: [5]}

BN_EPS = 1e-5


def _normalize_adj(adj):
    """D^-1/2 A D^-1/2 with a zero-degree guard (shared by kernel wrapper and
    reference so the two can never diverge on isolated nodes)."""
    deg = adj.sum(-1)
    d = jnp.where(deg > 0, jax.lax.rsqrt(deg), 0.0)
    return (d[:, None] * adj * d[None, :]).astype(jnp.float32)


def _make_gcn_kernel(N, J, JP, C):
    """Kernel body with static sizes baked in.

    N : number of graphs (B*T);  J : nodes;  JP : J padded to a multiple of 8
    (sublane-aligned n-major row blocks);  C : channels (dim_in == dim_out).
    """
    NC = N * C

    def kernel(x_ref,      # [N*JP, C] f32, n-major rows (row = n*JP + j), zero pad
               nadj_ref,   # [J, J]    f32, pre-normalized adjacency
               w_ref,      # [C, 2*C]  bf16, [Wv^T | Wu^T]
               b_ref,      # [1, 2*C]  f32,  [bV  | bU ]
               gamma_ref,  # [J, 1]    f32
               beta_ref,   # [J, 1]    f32
               o_ref,      # [J, N*C]  f32, lane-dense output (doubles as x slab)
               v_scr,      # [J, N*C]  f32 scratch (V(x) lane-dense)
               u_scr):     # [J, N*C]  f32 scratch (U(x) lane-dense)
        # 1) Both Linear layers as ONE flattened MXU matmul.  bf16 operands
        #    (MXU DEFAULT contract, cast in-kernel), f32 accumulation.
        xb = x_ref[...].astype(jnp.bfloat16)
        uv = jnp.dot(xb, w_ref[...],
                     preferred_element_type=jnp.float32) + b_ref[...]

        # 2) Fold n-major row blocks into lane-dense [J, N*C] slabs.  Source
        #    slices are contiguous and sublane-aligned (r0 = n*JP, JP % 8 == 0);
        #    destinations are 32-lane-aligned.  The residual (f32 x) goes
        #    straight into o_ref so no third scratch slab is needed.
        for n in range(N):
            r0 = n * JP
            cs = slice(n * C, (n + 1) * C)
            v_scr[:, cs] = uv[r0:r0 + J, 0:C]
            u_scr[:, cs] = uv[r0:r0 + J, C:2 * C]
            o_ref[:, cs] = x_ref[r0:r0 + J, :]

        # 3) Lane-dense graph aggregation [J, J] @ [J, N*C] (+ U in one shot).
        #    K = 17 -> HIGHEST-precision f32 is negligible MXU work.
        y = jnp.dot(nadj_ref[...], v_scr[...],
                    preferred_element_type=jnp.float32,
                    precision=jax.lax.Precision.HIGHEST) + u_scr[...]

        # 4) BatchNorm1d(num_nodes), training-mode stats over (batch, channel)
        #    per node == contiguous last-axis reductions.  Two-pass variance
        #    (matches the reference; avoids E[y^2]-E[y]^2 cancellation).
        inv_n = 1.0 / NC
        mean = jnp.sum(y, axis=-1, keepdims=True) * inv_n
        ctr = y - mean
        var = jnp.sum(ctr * ctr, axis=-1, keepdims=True) * inv_n
        inv_std = jax.lax.rsqrt(var + BN_EPS)

        # 5) gamma/beta + residual + ReLU fused into the single lane-dense
        #    (N*C = 512-wide, unmasked) output store.
        o_ref[...] = jnp.maximum(
            o_ref[...] + ctr * inv_std * gamma_ref[...] + beta_ref[...], 0.0)

    return kernel


def make_gcn_forward(adj, wU, bU, wV, bV, gamma, beta, *, B, T, J, C):
    """Build a jitted forward fn.  All parameter-only prep is done here, once."""
    N = B * T
    JP = ((J + 7) // 8) * 8

    # ---- hoisted, parameter-only constants (never on the per-call path) ----
    norm_adj = _normalize_adj(jnp.asarray(adj, jnp.float32))                 # [J, J]
    w_fused = jnp.concatenate([wV.T, wU.T], axis=1).astype(jnp.bfloat16)     # [C, 2C]
    b_fused = jnp.concatenate([bV.reshape(1, -1), bU.reshape(1, -1)],
                              axis=1).astype(jnp.float32)                    # [1, 2C]
    gamma2 = jnp.asarray(gamma, jnp.float32).reshape(J, 1)
    beta2 = jnp.asarray(beta, jnp.float32).reshape(J, 1)

    kernel = _make_gcn_kernel(N, J, JP, C)

    def spec(shape):
        nd = len(shape)
        return pl.BlockSpec(shape, lambda i, _nd=nd: (0,) * _nd)

    call = pl.pallas_call(
        kernel,
        grid=(1,),
        in_specs=[spec((N * JP, C)), spec((J, J)), spec((C, 2 * C)),
                  spec((1, 2 * C)), spec((J, 1)), spec((J, 1))],
        out_specs=spec((J, N * C)),
        out_shape=jax.ShapeDtypeStruct((J, N * C), jnp.float32),
        scratch_shapes=[pltpu.VMEM((J, N * C), jnp.float32),
                        pltpu.VMEM((J, N * C), jnp.float32)],
        compiler_params=pltpu.CompilerParams(
            dimension_semantics=("arbitrary",)),
    )

    @jax.jit
    def forward(x):
        # x: [B, T, J, C] f32 -> single n-major padded row feed (f32).
        xr = x.reshape(N, J, C).astype(jnp.float32)
        x_pad = jnp.pad(xr, ((0, 0), (0, JP - J), (0, 0))).reshape(N * JP, C)
        o_lane = call(x_pad, norm_adj, w_fused, b_fused, gamma2, beta2)
        # layout plumbing back to [B, T, J, C] (fused under the same jit)
        out = o_lane.reshape(J, N, C).transpose(1, 0, 2)
        return out.reshape(B, T, J, C)

    return forward


def gcn_reference(x, adj, wU, bU, wV, bV, gamma, beta):
    """Pure-JAX reference mirroring the PyTorch forward (spatial, training BN).

    Linear matmuls use bf16-rounded operands with f32 accumulation — the TPU
    MXU's DEFAULT-precision contract (same as the kernel); everything else f32.
    """
    B, T, J, C = x.shape
    xr = x.reshape(-1, J, C)
    norm_adj = _normalize_adj(adj)
    xb = xr.astype(jnp.bfloat16)
    Vx = jnp.einsum('njc,dc->njd', xb, wV.astype(jnp.bfloat16),
                    preferred_element_type=jnp.float32) + bV.reshape(1, 1, -1)
    Ux = jnp.einsum('njc,dc->njd', xb, wU.astype(jnp.bfloat16),
                    preferred_element_type=jnp.float32) + bU.reshape(1, 1, -1)
    y = jnp.einsum('jk,nkd->njd', norm_adj, Vx,
                   precision=jax.lax.Precision.HIGHEST) + Ux
    mean = jnp.mean(y, axis=(0, 2), keepdims=True)
    var = jnp.mean((y - mean) ** 2, axis=(0, 2), keepdims=True)
    bn = (y - mean) / jnp.sqrt(var + BN_EPS)
    bn = bn * gamma.reshape(1, J, 1) + beta.reshape(1, J, 1)
    out = jnp.maximum(xr + bn, 0.0)
    return out.reshape(B, T, J, C)


if __name__ == "__main__":
    B, T, J = 2, 8, 17           # num_nodes = 17 (CONNECTIONS covers 0..16)
    C = 32                       # dim_in == dim_out -> residual branch used

    # Spatial adjacency from CONNECTIONS
    adj_np = np.zeros((J, J), dtype=np.float32)
    for i in range(J):
        for jj in CONNECTIONS[i]:
            adj_np[i, jj] = 1.0
    adj = jnp.asarray(adj_np)

    key = jax.random.PRNGKey(0)
    k_x, k_wu, k_bu, k_wv, k_bv = jax.random.split(key, 5)

    std = math.sqrt(2.0 / C)
    wU = jax.random.normal(k_wu, (C, C), jnp.float32) * std
    wV = jax.random.normal(k_wv, (C, C), jnp.float32) * std
    bound = 1.0 / math.sqrt(C)
    bU = jax.random.uniform(k_bu, (C,), jnp.float32, -bound, bound)
    bV = jax.random.uniform(k_bv, (C,), jnp.float32, -bound, bound)
    gamma = jnp.ones((J,), jnp.float32)    # batch_norm.weight = 1
    beta = jnp.zeros((J,), jnp.float32)    # batch_norm.bias = 0

    x = jax.random.normal(k_x, (B, T, J, C), jnp.float32)

    fwd = make_gcn_forward(adj, wU, bU, wV, bV, gamma, beta, B=B, T=T, J=J, C=C)
    out = jax.block_until_ready(fwd(x))

    ref = jax.block_until_ready(
        gcn_reference(x, adj, wU, bU, wV, bV, gamma, beta))
    np.testing.assert_allclose(np.asarray(out), np.asarray(ref),
                               rtol=1e-3, atol=1e-3)

    print("KERNEL_OK")
</pallas_src>

<mosaic_0001>
module attributes {stable_mosaic.version = 11 : i64} {
  func.func @kernel(%arg0: i32, %arg1: memref<384x32xf32, #tpu.memory_space<vmem>>, %arg2: memref<17x17xf32, #tpu.memory_space<vmem>>, %arg3: memref<32x64xbf16, #tpu.memory_space<vmem>>, %arg4: memref<1x64xf32, #tpu.memory_space<vmem>>, %arg5: memref<17x1xf32, #tpu.memory_space<vmem>>, %arg6: memref<17x1xf32, #tpu.memory_space<vmem>>, %arg7: memref<17x512xf32, #tpu.memory_space<vmem>>, %arg8: memref<17x512xf32, #tpu.memory_space<vmem>>, %arg9: memref<17x512xf32, #tpu.memory_space<vmem>>) attributes {dimension_semantics = [#tpu.dimension_semantics<arbitrary>], iteration_bounds = array<i64: 1>, scalar_prefetch = 0 : i64, scratch_operands = 2 : i64, tpu.core_type = #tpu.core_type<tc>, window_params = [{pipeline_mode = #tpu.pipeline_mode<synchronous>, transform_indices = @transform_0, window_bounds = array<i64: 384, 32>}, {pipeline_mode = #tpu.pipeline_mode<synchronous>, transform_indices = @transform_1, window_bounds = array<i64: 17, 17>}, {pipeline_mode = #tpu.pipeline_mode<synchronous>, transform_indices = @transform_2, window_bounds = array<i64: 32, 64>}, {pipeline_mode = #tpu.pipeline_mode<synchronous>, transform_indices = @transform_3, window_bounds = array<i64: 1, 64>}, {pipeline_mode = #tpu.pipeline_mode<synchronous>, transform_indices = @transform_4, window_bounds = array<i64: 17, 1>}, {pipeline_mode = #tpu.pipeline_mode<synchronous>, transform_indices = @transform_5, window_bounds = array<i64: 17, 1>}, {pipeline_mode = #tpu.pipeline_mode<synchronous>, transform_indices = @transform_6, window_bounds = array<i64: 17, 512>}]} {
    %c0 = arith.constant 0 : index
    %c0_0 = arith.constant 0 : index
    %0 = vector.load %arg1[%c0, %c0_0] : memref<384x32xf32, #tpu.memory_space<vmem>>, vector<384x32xf32>
    %1 = arith.truncf %0 : vector<384x32xf32> to vector<384x32xbf16>
    %c0_1 = arith.constant 0 : index
    %c0_2 = arith.constant 0 : index
    %2 = vector.load %arg3[%c0_1, %c0_2] : memref<32x64xbf16, #tpu.memory_space<vmem>>, vector<32x64xbf16>
    %cst = arith.constant dense<0.000000e+00> : vector<384x64xf32>
    %3 = tpu.matmul %1, %2, %cst {dimension_numbers = #tpu.dot_dimension_numbers<[1], [0], [0], [1], [0, 0, 1, 1], [], []>} : vector<384x32xbf16>, vector<32x64xbf16>, vector<384x64xf32> -> vector<384x64xf32>
    %c0_3 = arith.constant 0 : index
    %c0_4 = arith.constant 0 : index
    %4 = vector.load %arg4[%c0_3, %c0_4] : memref<1x64xf32, #tpu.memory_space<vmem>>, vector<1x64xf32>
    %5 = vector.broadcast %4 : vector<1x64xf32> to vector<384x64xf32>
    %6 = arith.addf %3, %5 : vector<384x64xf32>
    %7 = vector.extract_strided_slice %6 {offsets = [0, 0], sizes = [17, 32], strides = [1, 1]} : vector<384x64xf32> to vector<17x32xf32>
    %c0_5 = arith.constant 0 : index
    %c0_6 = arith.constant 0 : index
    %8 = vector.load %arg8[%c0_5, %c0_6] : memref<17x512xf32, #tpu.memory_space<vmem>>, vector<17x32xf32>
    tpu.vector_store %arg8[%c0_5, %c0_6], %7 {strides = array<i32>} : memref<17x512xf32, #tpu.memory_space<vmem>>, vector<17x32xf32>,
    %9 = vector.extract_strided_slice %6 {offsets = [0, 32], sizes = [17, 32], strides = [1, 1]} : vector<384x64xf32> to vector<17x32xf32>
    %c0_7 = arith.constant 0 : index
    %c0_8 = arith.constant 0 : index
    %10 = vector.load %arg9[%c0_7, %c0_8] : memref<17x512xf32, #tpu.memory_space<vmem>>, vector<17x32xf32>
    tpu.vector_store %arg9[%c0_7, %c0_8], %9 {strides = array<i32>} : memref<17x512xf32, #tpu.memory_space<vmem>>, vector<17x32xf32>,
    %c0_9 = arith.constant 0 : index
    %c0_10 = arith.constant 0 : index
    %11 = vector.load %arg1[%c0_9, %c0_10] : memref<384x32xf32, #tpu.memory_space<vmem>>, vector<17x32xf32>
    %c0_11 = arith.constant 0 : index
    %c0_12 = arith.constant 0 : index
    %12 = vector.load %arg7[%c0_11, %c0_12] : memref<17x512xf32, #tpu.memory_space<vmem>>, vector<17x32xf32>
    tpu.vector_store %arg7[%c0_11, %c0_12], %11 {strides = array<i32>} : memref<17x512xf32, #tpu.memory_space<vmem>>, vector<17x32xf32>,
    %13 = vector.extract_strided_slice %6 {offsets = [24, 0], sizes = [17, 32], strides = [1, 1]} : vector<384x64xf32> to vector<17x32xf32>
    %c0_13 = arith.constant 0 : index
    %c32 = arith.constant 32 : index
    %14 = vector.load %arg8[%c0_13, %c32] : memref<17x512xf32, #tpu.memory_space<vmem>>, vector<17x32xf32>
    tpu.vector_store %arg8[%c0_13, %c32], %13 {strides = array<i32>} : memref<17x512xf32, #tpu.memory_space<vmem>>, vector<17x32xf32>,
    %15 = vector.extract_strided_slice %6 {offsets = [24, 32], sizes = [17, 32], strides = [1, 1]} : vector<384x64xf32> to vector<17x32xf32>
    %c0_14 = arith.constant 0 : index
    %c32_15 = arith.constant 32 : index
    %16 = vector.load %arg9[%c0_14, %c32_15] : memref<17x512xf32, #tpu.memory_space<vmem>>, vector<17x32xf32>
    tpu.vector_store %arg9[%c0_14, %c32_15], %15 {strides = array<i32>} : memref<17x512xf32, #tpu.memory_space<vmem>>, vector<17x32xf32>,
    %c24 = arith.constant 24 : index
    %c0_16 = arith.constant 0 : index
    %17 = vector.load %arg1[%c24, %c0_16] : memref<384x32xf32, #tpu.memory_space<vmem>>, vector<17x32xf32>
    %c0_17 = arith.constant 0 : index
    %c32_18 = arith.constant 32 : index
    %18 = vector.load %arg7[%c0_17, %c32_18] : memref<17x512xf32, #tpu.memory_space<vmem>>, vector<17x32xf32>
    tpu.vector_store %arg7[%c0_17, %c32_18], %17 {strides = array<i32>} : memref<17x512xf32, #tpu.memory_space<vmem>>, vector<17x32xf32>,
    %19 = vector.extract_strided_slice %6 {offsets = [48, 0], sizes = [17, 32], strides = [1, 1]} : vector<384x64xf32> to vector<17x32xf32>
    %c0_19 = arith.constant 0 : index
    %c64 = arith.constant 64 : index
    %20 = vector.load %arg8[%c0_19, %c64] : memref<17x512xf32, #tpu.memory_space<vmem>>, vector<17x32xf32>
    tpu.vector_store %arg8[%c0_19, %c64], %19 {strides = array<i32>} : memref<17x512xf32, #tpu.memory_space<vmem>>, vector<17x32xf32>,
    %21 = vector.extract_strided_slice %6 {offsets = [48, 32], sizes = [17, 32], strides = [1, 1]} : vector<384x64xf32> to vector<17x32xf32>
    %c0_20 = arith.constant 0 : index
    %c64_21 = arith.constant 64 : index
    %22 = vector.load %arg9[%c0_20, %c64_21] : memref<17x512xf32, #tpu.memory_space<vmem>>, vector<17x32xf32>
    tpu.vector_store %arg9[%c0_20, %c64_21], %21 {strides = array<i32>} : memref<17x512xf32, #tpu.memory_space<vmem>>, vector<17x32xf32>,
    %c48 = arith.constant 48 : index
    %c0_22 = arith.constant 0 : index
    %23 = vector.load %arg1[%c48, %c0_22] : memref<384x32xf32, #tpu.memory_space<vmem>>, vector<17x32xf32>
    %c0_23 = arith.constant 0 : index
    %c64_24 = arith.constant 64 : index
    %24 = vector.load %arg7[%c0_23, %c64_24] : memref<17x512xf32, #tpu.memory_space<vmem>>, vector<17x32xf32>
    tpu.vector_store %arg7[%c0_23, %c64_24], %23 {strides = array<i32>} : memref<17x512xf32, #tpu.memory_space<vmem>>, vector<17x32xf32>,
    %25 = vector.extract_strided_slice %6 {offsets = [72, 0], sizes = [17, 32], strides = [1, 1]} : vector<384x64xf32> to vector<17x32xf32>
    %c0_25 = arith.constant 0 : index
    %c96 = arith.constant 96 : index
    %26 = vector.load %arg8[%c0_25, %c96] : memref<17x512xf32, #tpu.memory_space<vmem>>, vector<17x32xf32>
    tpu.vector_store %arg8[%c0_25, %c96], %25 {strides = array<i32>} : memref<17x512xf32, #tpu.memory_space<vmem>>, vector<17x32xf32>,
    %27 = vector.extract_strided_slice %6 {offsets = [72, 32], sizes = [17, 32], strides = [1, 1]} : vector<384x64xf32> to vector<17x32xf32>
    %c0_26 = arith.constant 0 : index
    %c96_27 = arith.constant 96 : index
    %28 = vector.load %arg9[%c0_26, %c96_27] : memref<17x512xf32, #tpu.memory_space<vmem>>, vector<17x32xf32>
    tpu.vector_store %arg9[%c0_26, %c96_27], %27 {strides = array<i32>} : memref<17x512xf32, #tpu.memory_space<vmem>>, vector<17x32xf32>,
    %c72 = arith.constant 72 : index
    %c0_28 = arith.constant 0 : index
    %29 = vector.load %arg1[%c72, %c0_28] : memref<384x32xf32, #tpu.memory_space<vmem>>, vector<17x32xf32>
    %c0_29 = arith.constant 0 : index
    %c96_30 = arith.constant 96 : index
    %30 = vector.load %arg7[%c0_29, %c96_30] : memref<17x512xf32, #tpu.memory_space<vmem>>, vector<17x32xf32>
    tpu.vector_store %arg7[%c0_29, %c96_30], %29 {strides = array<i32>} : memref<17x512xf32, #tpu.memory_space<vmem>>, vector<17x32xf32>,
    %31 = vector.extract_strided_slice %6 {offsets = [96, 0], sizes = [17, 32], strides = [1, 1]} : vector<384x64xf32> to vector<17x32xf32>
    %c0_31 = arith.constant 0 : index
    %c128 = arith.constant 128 : index
    %32 = vector.load %arg8[%c0_31, %c128] : memref<17x512xf32, #tpu.memory_space<vmem>>, vector<17x32xf32>
    tpu.vector_store %arg8[%c0_31, %c128], %31 {strides = array<i32>} : memref<17x512xf32, #tpu.memory_space<vmem>>, vector<17x32xf32>,
    %33 = vector.extract_strided_slice %6 {offsets = [96, 32], sizes = [17, 32], strides = [1, 1]} : vector<384x64xf32> to vector<17x32xf32>
    %c0_32 = arith.constant 0 : index
    %c128_33 = arith.constant 128 : index
    %34 = vector.load %arg9[%c0_32, %c128_33] : memref<17x512xf32, #tpu.memory_space<vmem>>, vector<17x32xf32>
    tpu.vector_store %arg9[%c0_32, %c128_33], %33 {strides = array<i32>} : memref<17x512xf32, #tpu.memory_space<vmem>>, vector<17x32xf32>,
    %c96_34 = arith.constant 96 : index
    %c0_35 = arith.constant 0 : index
    %35 = vector.load %arg1[%c96_34, %c0_35] : memref<384x32xf32, #tpu.memory_space<vmem>>, vector<17x32xf32>
    %c0_36 = arith.constant 0 : index
    %c128_37 = arith.constant 128 : index
    %36 = vector.load %arg7[%c0_36, %c128_37] : memref<17x512xf32, #tpu.memory_space<vmem>>, vector<17x32xf32>
    tpu.vector_store %arg7[%c0_36, %c128_37], %35 {strides = array<i32>} : memref<17x512xf32, #tpu.memory_space<vmem>>, vector<17x32xf32>,
    %37 = vector.extract_strided_slice %6 {offsets = [120, 0], sizes = [17, 32], strides = [1, 1]} : vector<384x64xf32> to vector<17x32xf32>
    %c0_38 = arith.constant 0 : index
    %c160 = arith.constant 160 : index
    %38 = vector.load %arg8[%c0_38, %c160] : memref<17x512xf32, #tpu.memory_space<vmem>>, vector<17x32xf32>
    tpu.vector_store %arg8[%c0_38, %c160], %37 {strides = array<i32>} : memref<17x512xf32, #tpu.memory_space<vmem>>, vector<17x32xf32>,
    %39 = vector.extract_strided_slice %6 {offsets = [120, 32], sizes = [17, 32], strides = [1, 1]} : vector<384x64xf32> to vector<17x32xf32>
    %c0_39 = arith.constant 0 : index
    %c160_40 = arith.constant 160 : index
    %40 = vector.load %arg9[%c0_39, %c160_40] : memref<17x512xf32, #tpu.memory_space<vmem>>, vector<17x32xf32>
    tpu.vector_store %arg9[%c0_39, %c160_40], %39 {strides = array<i32>} : memref<17x512xf32, #tpu.memory_space<vmem>>, vector<17x32xf32>,
    %c120 = arith.constant 120 : index
    %c0_41 = arith.constant 0 : index
    %41 = vector.load %arg1[%c120, %c0_41] : memref<384x32xf32, #tpu.memory_space<vmem>>, vector<17x32xf32>
    %c0_42 = arith.constant 0 : index
    %c160_43 = arith.constant 160 : index
    %42 = vector.load %arg7[%c0_42, %c160_43] : memref<17x512xf32, #tpu.memory_space<vmem>>, vector<17x32xf32>
    tpu.vector_store %arg7[%c0_42, %c160_43], %41 {strides = array<i32>} : memref<17x512xf32, #tpu.memory_space<vmem>>, vector<17x32xf32>,
    %43 = vector.extract_strided_slice %6 {offsets = [144, 0], sizes = [17, 32], strides = [1, 1]} : vector<384x64xf32> to vector<17x32xf32>
    %c0_44 = arith.constant 0 : index
    %c192 = arith.constant 192 : index
    %44 = vector.load %arg8[%c0_44, %c192] : memref<17x512xf32, #tpu.memory_space<vmem>>, vector<17x32xf32>
    tpu.vector_store %arg8[%c0_44, %c192], %43 {strides = array<i32>} : memref<17x512xf32, #tpu.memory_space<vmem>>, vector<17x32xf32>,
    %45 = vector.extract_strided_slice %6 {offsets = [144, 32], sizes = [17, 32], strides = [1, 1]} : vector<384x64xf32> to vector<17x32xf32>
    %c0_45 = arith.constant 0 : index
    %c192_46 = arith.constant 192 : index
    %46 = vector.load %arg9[%c0_45, %c192_46] : memref<17x512xf32, #tpu.memory_space<vmem>>, vector<17x32xf32>
    tpu.vector_store %arg9[%c0_45, %c192_46], %45 {strides = array<i32>} : memref<17x512xf32, #tpu.memory_space<vmem>>, vector<17x32xf32>,
    %c144 = arith.constant 144 : index
    %c0_47 = arith.constant 0 : index
    %47 = vector.load %arg1[%c144, %c0_47] : memref<384x32xf32, #tpu.memory_space<vmem>>, vector<17x32xf32>
    %c0_48 = arith.constant 0 : index
    %c192_49 = arith.constant 192 : index
    %48 = vector.load %arg7[%c0_48, %c192_49] : memref<17x512xf32, #tpu.memory_space<vmem>>, vector<17x32xf32>
    tpu.vector_store %arg7[%c0_48, %c192_49], %47 {strides = array<i32>} : memref<17x512xf32, #tpu.memory_space<vmem>>, vector<17x32xf32>,
    %49 = vector.extract_strided_slice %6 {offsets = [168, 0], sizes = [17, 32], strides = [1, 1]} : vector<384x64xf32> to vector<17x32xf32>
    %c0_50 = arith.constant 0 : index
    %c224 = arith.constant 224 : index
    %50 = vector.load %arg8[%c0_50, %c224] : memref<17x512xf32, #tpu.memory_space<vmem>>, vector<17x32xf32>
    tpu.vector_store %arg8[%c0_50, %c224], %49 {strides = array<i32>} : memref<17x512xf32, #tpu.memory_space<vmem>>, vector<17x32xf32>,
    %51 = vector.extract_strided_slice %6 {offsets = [168, 32], sizes = [17, 32], strides = [1, 1]} : vector<384x64xf32> to vector<17x32xf32>
    %c0_51 = arith.constant 0 : index
    %c224_52 = arith.constant 224 : index
    %52 = vector.load %arg9[%c0_51, %c224_52] : memref<17x512xf32, #tpu.memory_space<vmem>>, vector<17x32xf32>
    tpu.vector_store %arg9[%c0_51, %c224_52], %51 {strides = array<i32>} : memref<17x512xf32, #tpu.memory_space<vmem>>, vector<17x32xf32>,
    %c168 = arith.constant 168 : index
    %c0_53 = arith.constant 0 : index
    %53 = vector.load %arg1[%c168, %c0_53] : memref<384x32xf32, #tpu.memory_space<vmem>>, vector<17x32xf32>
    %c0_54 = arith.constant 0 : index
    %c224_55 = arith.constant 224 : index
    %54 = vector.load %arg7[%c0_54, %c224_55] : memref<17x512xf32, #tpu.memory_space<vmem>>, vector<17x32xf32>
    tpu.vector_store %arg7[%c0_54, %c224_55], %53 {strides = array<i32>} : memref<17x512xf32, #tpu.memory_space<vmem>>, vector<17x32xf32>,
    %55 = vector.extract_strided_slice %6 {offsets = [192, 0], sizes = [17, 32], strides = [1, 1]} : vector<384x64xf32> to vector<17x32xf32>
    %c0_56 = arith.constant 0 : index
    %c256 = arith.constant 256 : index
    %56 = vector.load %arg8[%c0_56, %c256] : memref<17x512xf32, #tpu.memory_space<vmem>>, vector<17x32xf32>
    tpu.vector_store %arg8[%c0_56, %c256], %55 {strides = array<i32>} : memref<17x512xf32, #tpu.memory_space<vmem>>, vector<17x32xf32>,
    %57 = vector.extract_strided_slice %6 {offsets = [192, 32], sizes = [17, 32], strides = [1, 1]} : vector<384x64xf32> to vector<17x32xf32>
    %c0_57 = arith.constant 0 : index
    %c256_58 = arith.constant 256 : index
    %58 = vector.load %arg9[%c0_57, %c256_58] : memref<17x512xf32, #tpu.memory_space<vmem>>, vector<17x32xf32>
    tpu.vector_store %arg9[%c0_57, %c256_58], %57 {strides = array<i32>} : memref<17x512xf32, #tpu.memory_space<vmem>>, vector<17x32xf32>,
    %c192_59 = arith.constant 192 : index
    %c0_60 = arith.constant 0 : index
    %59 = vector.load %arg1[%c192_59, %c0_60] : memref<384x32xf32, #tpu.memory_space<vmem>>, vector<17x32xf32>
    %c0_61 = arith.constant 0 : index
    %c256_62 = arith.constant 256 : index
    %60 = vector.load %arg7[%c0_61, %c256_62] : memref<17x512xf32, #tpu.memory_space<vmem>>, vector<17x32xf32>
    tpu.vector_store %arg7[%c0_61, %c256_62], %59 {strides = array<i32>} : memref<17x512xf32, #tpu.memory_space<vmem>>, vector<17x32xf32>,
    %61 = vector.extract_strided_slice %6 {offsets = [216, 0], sizes = [17, 32], strides = [1, 1]} : vector<384x64xf32> to vector<17x32xf32>
    %c0_63 = arith.constant 0 : index
    %c288 = arith.constant 288 : index
    %62 = vector.load %arg8[%c0_63, %c288] : memref<17x512xf32, #tpu.memory_space<vmem>>, vector<17x32xf32>
    tpu.vector_store %arg8[%c0_63, %c288], %61 {strides = array<i32>} : memref<17x512xf32, #tpu.memory_space<vmem>>, vector<17x32xf32>,
    %63 = vector.extract_strided_slice %6 {offsets = [216, 32], sizes = [17, 32], strides = [1, 1]} : vector<384x64xf32> to vector<17x32xf32>
    %c0_64 = arith.constant 0 : index
    %c288_65 = arith.constant 288 : index
    %64 = vector.load %arg9[%c0_64, %c288_65] : memref<17x512xf32, #tpu.memory_space<vmem>>, vector<17x32xf32>
    tpu.vector_store %arg9[%c0_64, %c288_65], %63 {strides = array<i32>} : memref<17x512xf32, #tpu.memory_space<vmem>>, vector<17x32xf32>,
    %c216 = arith.constant 216 : index
    %c0_66 = arith.constant 0 : index
    %65 = vector.load %arg1[%c216, %c0_66] : memref<384x32xf32, #tpu.memory_space<vmem>>, vector<17x32xf32>
    %c0_67 = arith.constant 0 : index
    %c288_68 = arith.constant 288 : index
    %66 = vector.load %arg7[%c0_67, %c288_68] : memref<17x512xf32, #tpu.memory_space<vmem>>, vector<17x32xf32>
    tpu.vector_store %arg7[%c0_67, %c288_68], %65 {strides = array<i32>} : memref<17x512xf32, #tpu.memory_space<vmem>>, vector<17x32xf32>,
    %67 = vector.extract_strided_slice %6 {offsets = [240, 0], sizes = [17, 32], strides = [1, 1]} : vector<384x64xf32> to vector<17x32xf32>
    %c0_69 = arith.constant 0 : index
    %c320 = arith.constant 320 : index
    %68 = vector.load %arg8[%c0_69, %c320] : memref<17x512xf32, #tpu.memory_space<vmem>>, vector<17x32xf32>
    tpu.vector_store %arg8[%c0_69, %c320], %67 {strides = array<i32>} : memref<17x512xf32, #tpu.memory_space<vmem>>, vector<17x32xf32>,
    %69 = vector.extract_strided_slice %6 {offsets = [240, 32], sizes = [17, 32], strides = [1, 1]} : vector<384x64xf32> to vector<17x32xf32>
    %c0_70 = arith.constant 0 : index
    %c320_71 = arith.constant 320 : index
    %70 = vector.load %arg9[%c0_70, %c320_71] : memref<17x512xf32, #tpu.memory_space<vmem>>, vector<17x32xf32>
    tpu.vector_store %arg9[%c0_70, %c320_71], %69 {strides = array<i32>} : memref<17x512xf32, #tpu.memory_space<vmem>>, vector<17x32xf32>,
    %c240 = arith.constant 240 : index
    %c0_72 = arith.constant 0 : index
    %71 = vector.load %arg1[%c240, %c0_72] : memref<384x32xf32, #tpu.memory_space<vmem>>, vector<17x32xf32>
    %c0_73 = arith.constant 0 : index
    %c320_74 = arith.constant 320 : index
    %72 = vector.load %arg7[%c0_73, %c320_74] : memref<17x512xf32, #tpu.memory_space<vmem>>, vector<17x32xf32>
    tpu.vector_store %arg7[%c0_73, %c320_74], %71 {strides = array<i32>} : memref<17x512xf32, #tpu.memory_space<vmem>>, vector<17x32xf32>,
    %73 = vector.extract_strided_slice %6 {offsets = [264, 0], sizes = [17, 32], strides = [1, 1]} : vector<384x64xf32> to vector<17x32xf32>
    %c0_75 = arith.constant 0 : index
    %c352 = arith.constant 352 : index
    %74 = vector.load %arg8[%c0_75, %c352] : memref<17x512xf32, #tpu.memory_space<vmem>>, vector<17x32xf32>
    tpu.vector_store %arg8[%c0_75, %c352], %73 {strides = array<i32>} : memref<17x512xf32, #tpu.memory_space<vmem>>, vector<17x32xf32>,
    %75 = vector.extract_strided_slice %6 {offsets = [264, 32], sizes = [17, 32], strides = [1, 1]} : vector<384x64xf32> to vector<17x32xf32>
    %c0_76 = arith.constant 0 : index
    %c352_77 = arith.constant 352 : index
    %76 = vector.load %arg9[%c0_76, %c352_77] : memref<17x512xf32, #tpu.memory_space<vmem>>, vector<17x32xf32>
    tpu.vector_store %arg9[%c0_76, %c352_77], %75 {strides = array<i32>} : memref<17x512xf32, #tpu.memory_space<vmem>>, vector<17x32xf32>,
    %c264 = arith.constant 264 : index
    %c0_78 = arith.constant 0 : index
    %77 = vector.load %arg1[%c264, %c0_78] : memref<384x32xf32, #tpu.memory_space<vmem>>, vector<17x32xf32>
    %c0_79 = arith.constant 0 : index
    %c352_80 = arith.constant 352 : index
    %78 = vector.load %arg7[%c0_79, %c352_80] : memref<17x512xf32, #tpu.memory_space<vmem>>, vector<17x32xf32>
    tpu.vector_store %arg7[%c0_79, %c352_80], %77 {strides = array<i32>} : memref<17x512xf32, #tpu.memory_space<vmem>>, vector<17x32xf32>,
    %79 = vector.extract_strided_slice %6 {offsets = [288, 0], sizes = [17, 32], strides = [1, 1]} : vector<384x64xf32> to vector<17x32xf32>
    %c0_81 = arith.constant 0 : index
    %c384 = arith.constant 384 : index
    %80 = vector.load %arg8[%c0_81, %c384] : memref<17x512xf32, #tpu.memory_space<vmem>>, vector<17x32xf32>
    tpu.vector_store %arg8[%c0_81, %c384], %79 {strides = array<i32>} : memref<17x512xf32, #tpu.memory_space<vmem>>, vector<17x32xf32>,
    %81 = vector.extract_strided_slice %6 {offsets = [288, 32], sizes = [17, 32], strides = [1, 1]} : vector<384x64xf32> to vector<17x32xf32>
    %c0_82 = arith.constant 0 : index
    %c384_83 = arith.constant 384 : index
    %82 = vector.load %arg9[%c0_82, %c384_83] : memref<17x512xf32, #tpu.memory_space<vmem>>, vector<17x32xf32>
    tpu.vector_store %arg9[%c0_82, %c384_83], %81 {strides = array<i32>} : memref<17x512xf32, #tpu.memory_space<vmem>>, vector<17x32xf32>,
    %c288_84 = arith.constant 288 : index
    %c0_85 = arith.constant 0 : index
    %83 = vector.load %arg1[%c288_84, %c0_85] : memref<384x32xf32, #tpu.memory_space<vmem>>, vector<17x32xf32>
    %c0_86 = arith.constant 0 : index
    %c384_87 = arith.constant 384 : index
    %84 = vector.load %arg7[%c0_86, %c384_87] : memref<17x512xf32, #tpu.memory_space<vmem>>, vector<17x32xf32>
    tpu.vector_store %arg7[%c0_86, %c384_87], %83 {strides = array<i32>} : memref<17x512xf32, #tpu.memory_space<vmem>>, vector<17x32xf32>,
    %85 = vector.extract_strided_slice %6 {offsets = [312, 0], sizes = [17, 32], strides = [1, 1]} : vector<384x64xf32> to vector<17x32xf32>
    %c0_88 = arith.constant 0 : index
    %c416 = arith.constant 416 : index
    %86 = vector.load %arg8[%c0_88, %c416] : memref<17x512xf32, #tpu.memory_space<vmem>>, vector<17x32xf32>
    tpu.vector_store %arg8[%c0_88, %c416], %85 {strides = array<i32>} : memref<17x512xf32, #tpu.memory_space<vmem>>, vector<17x32xf32>,
    %87 = vector.extract_strided_slice %6 {offsets = [312, 32], sizes = [17, 32], strides = [1, 1]} : vector<384x64xf32> to vector<17x32xf32>
    %c0_89 = arith.constant 0 : index
    %c416_90 = arith.constant 416 : index
    %88 = vector.load %arg9[%c0_89, %c416_90] : memref<17x512xf32, #tpu.memory_space<vmem>>, vector<17x32xf32>
    tpu.vector_store %arg9[%c0_89, %c416_90], %87 {strides = array<i32>} : memref<17x512xf32, #tpu.memory_space<vmem>>, vector<17x32xf32>,
    %c312 = arith.constant 312 : index
    %c0_91 = arith.constant 0 : index
    %89 = vector.load %arg1[%c312, %c0_91] : memref<384x32xf32, #tpu.memory_space<vmem>>, vector<17x32xf32>
    %c0_92 = arith.constant 0 : index
    %c416_93 = arith.constant 416 : index
    %90 = vector.load %arg7[%c0_92, %c416_93] : memref<17x512xf32, #tpu.memory_space<vmem>>, vector<17x32xf32>
    tpu.vector_store %arg7[%c0_92, %c416_93], %89 {strides = array<i32>} : memref<17x512xf32, #tpu.memory_space<vmem>>, vector<17x32xf32>,
    %91 = vector.extract_strided_slice %6 {offsets = [336, 0], sizes = [17, 32], strides = [1, 1]} : vector<384x64xf32> to vector<17x32xf32>
    %c0_94 = arith.constant 0 : index
    %c448 = arith.constant 448 : index
    %92 = vector.load %arg8[%c0_94, %c448] : memref<17x512xf32, #tpu.memory_space<vmem>>, vector<17x32xf32>
    tpu.vector_store %arg8[%c0_94, %c448], %91 {strides = array<i32>} : memref<17x512xf32, #tpu.memory_space<vmem>>, vector<17x32xf32>,
    %93 = vector.extract_strided_slice %6 {offsets = [336, 32], sizes = [17, 32], strides = [1, 1]} : vector<384x64xf32> to vector<17x32xf32>
    %c0_95 = arith.constant 0 : index
    %c448_96 = arith.constant 448 : index
    %94 = vector.load %arg9[%c0_95, %c448_96] : memref<17x512xf32, #tpu.memory_space<vmem>>, vector<17x32xf32>
    tpu.vector_store %arg9[%c0_95, %c448_96], %93 {strides = array<i32>} : memref<17x512xf32, #tpu.memory_space<vmem>>, vector<17x32xf32>,
    %c336 = arith.constant 336 : index
    %c0_97 = arith.constant 0 : index
    %95 = vector.load %arg1[%c336, %c0_97] : memref<384x32xf32, #tpu.memory_space<vmem>>, vector<17x32xf32>
    %c0_98 = arith.constant 0 : index
    %c448_99 = arith.constant 448 : index
    %96 = vector.load %arg7[%c0_98, %c448_99] : memref<17x512xf32, #tpu.memory_space<vmem>>, vector<17x32xf32>
    tpu.vector_store %arg7[%c0_98, %c448_99], %95 {strides = array<i32>} : memref<17x512xf32, #tpu.memory_space<vmem>>, vector<17x32xf32>,
    %97 = vector.extract_strided_slice %6 {offsets = [360, 0], sizes = [17, 32], strides = [1, 1]} : vector<384x64xf32> to vector<17x32xf32>
    %c0_100 = arith.constant 0 : index
    %c480 = arith.constant 480 : index
    %98 = vector.load %arg8[%c0_100, %c480] : memref<17x512xf32, #tpu.memory_space<vmem>>, vector<17x32xf32>
    tpu.vector_store %arg8[%c0_100, %c480], %97 {strides = array<i32>} : memref<17x512xf32, #tpu.memory_space<vmem>>, vector<17x32xf32>,
    %99 = vector.extract_strided_slice %6 {offsets = [360, 32], sizes = [17, 32], strides = [1, 1]} : vector<384x64xf32> to vector<17x32xf32>
    %c0_101 = arith.constant 0 : index
    %c480_102 = arith.constant 480 : index
    %100 = vector.load %arg9[%c0_101, %c480_102] : memref<17x512xf32, #tpu.memory_space<vmem>>, vector<17x32xf32>
    tpu.vector_store %arg9[%c0_101, %c480_102], %99 {strides = array<i32>} : memref<17x512xf32, #tpu.memory_space<vmem>>, vector<17x32xf32>,
    %c360 = arith.constant 360 : index
    %c0_103 = arith.constant 0 : index
    %101 = vector.load %arg1[%c360, %c0_103] : memref<384x32xf32, #tpu.memory_space<vmem>>, vector<17x32xf32>
    %c0_104 = arith.constant 0 : index
    %c480_105 = arith.constant 480 : index
    %102 = vector.load %arg7[%c0_104, %c480_105] : memref<17x512xf32, #tpu.memory_space<vmem>>, vector<17x32xf32>
    tpu.vector_store %arg7[%c0_104, %c480_105], %101 {strides = array<i32>} : memref<17x512xf32, #tpu.memory_space<vmem>>, vector<17x32xf32>,
    %c0_106 = arith.constant 0 : index
    %c0_107 = arith.constant 0 : index
    %103 = vector.load %arg2[%c0_106, %c0_107] : memref<17x17xf32, #tpu.memory_space<vmem>>, vector<17x17xf32>
    %c0_108 = arith.constant 0 : index
    %c0_109 = arith.constant 0 : index
    %104 = vector.load %arg8[%c0_108, %c0_109] : memref<17x512xf32, #tpu.memory_space<vmem>>, vector<17x512xf32>
    %cst_110 = arith.constant dense<0.000000e+00> : vector<17x512xf32>
    %105 = tpu.matmul %103, %104, %cst_110 {dimension_numbers = #tpu.dot_dimension_numbers<[1], [0], [0], [1], [0, 0, 1, 1], [], []>, precision = #tpu.contract_precision<fp32>} : vector<17x17xf32>, vector<17x512xf32>, vector<17x512xf32> -> vector<17x512xf32>
    %c0_111 = arith.constant 0 : index
    %c0_112 = arith.constant 0 : index
    %106 = vector.load %arg9[%c0_111, %c0_112] : memref<17x512xf32, #tpu.memory_space<vmem>>, vector<17x512xf32>
    %107 = arith.addf %105, %106 : vector<17x512xf32>
    %cst_113 = arith.constant dense<0.000000e+00> : vector<17xf32>
    %108 = vector.multi_reduction <add>, %107, %cst_113 [1] : vector<17x512xf32> to vector<17xf32>
    %109 = vector.shape_cast %108 : vector<17xf32> to vector<17x1xf32>
    %cst_114 = arith.constant 0.001953125 : f32
    %110 = vector.broadcast %cst_114 : f32 to vector<17x1xf32>
    %111 = arith.mulf %109, %110 : vector<17x1xf32>
    %112 = vector.broadcast %111 : vector<17x1xf32> to vector<17x512xf32>
    %113 = arith.subf %107, %112 : vector<17x512xf32>
    %114 = arith.mulf %113, %113 : vector<17x512xf32>
    %cst_115 = arith.constant dense<0.000000e+00> : vector<17xf32>
    %115 = vector.multi_reduction <add>, %114, %cst_115 [1] : vector<17x512xf32> to vector<17xf32>
    %116 = vector.shape_cast %115 : vector<17xf32> to vector<17x1xf32>
    %cst_116 = arith.constant 0.001953125 : f32
    %117 = vector.broadcast %cst_116 : f32 to vector<17x1xf32>
    %118 = arith.mulf %116, %117 : vector<17x1xf32>
    %cst_117 = arith.constant 9.99999974E-6 : f32
    %119 = vector.broadcast %cst_117 : f32 to vector<17x1xf32>
    %120 = arith.addf %118, %119 : vector<17x1xf32>
    %121 = math.rsqrt %120 : vector<17x1xf32>
    %c0_118 = arith.constant 0 : index
    %c0_119 = arith.constant 0 : index
    %122 = vector.load %arg7[%c0_118, %c0_119] : memref<17x512xf32, #tpu.memory_space<vmem>>, vector<17x512xf32>
    %123 = vector.broadcast %121 : vector<17x1xf32> to vector<17x512xf32>
    %124 = arith.mulf %113, %123 : vector<17x512xf32>
    %c0_120 = arith.constant 0 : index
    %c0_121 = arith.constant 0 : index
    %125 = vector.load %arg5[%c0_120, %c0_121] : memref<17x1xf32, #tpu.memory_space<vmem>>, vector<17x1xf32>
    %126 = vector.broadcast %125 : vector<17x1xf32> to vector<17x512xf32>
    %127 = arith.mulf %124, %126 : vector<17x512xf32>
    %128 = arith.addf %122, %127 : vector<17x512xf32>
    %c0_122 = arith.constant 0 : index
    %c0_123 = arith.constant 0 : index
    %129 = vector.load %arg6[%c0_122, %c0_123] : memref<17x1xf32, #tpu.memory_space<vmem>>, vector<17x1xf32>
    %130 = vector.broadcast %129 : vector<17x1xf32> to vector<17x512xf32>
    %131 = arith.addf %128, %130 : vector<17x512xf32>
    %cst_124 = arith.constant 0.000000e+00 : f32
    %132 = vector.broadcast %cst_124 : f32 to vector<17x512xf32>
    %133 = arith.maximumf %131, %132 : vector<17x512xf32>
    %c0_125 = arith.constant 0 : index
    %c0_126 = arith.constant 0 : index
    %134 = vector.load %arg7[%c0_125, %c0_126] : memref<17x512xf32, #tpu.memory_space<vmem>>, vector<17x512xf32>
    tpu.vector_store %arg7[%c0_125, %c0_126], %133 {strides = array<i32>} : memref<17x512xf32, #tpu.memory_space<vmem>>, vector<17x512xf32>,
    return
  }
  func.func @transform_0(%arg0: i32) -> (i32, i32) {
    %c0_i32 = arith.constant 0 : i32
    %c0_i32_0 = arith.constant 0 : i32
    %c0_i32_1 = arith.constant 0 : i32
    return %c0_i32, %c0_i32_0 : i32, i32
  }
  func.func @transform_1(%arg0: i32) -> (i32, i32) {
    %c0_i32 = arith.constant 0 : i32
    %c0_i32_0 = arith.constant 0 : i32
    %c0_i32_1 = arith.constant 0 : i32
    return %c0_i32, %c0_i32_0 : i32, i32
  }
  func.func @transform_2(%arg0: i32) -> (i32, i32) {
    %c0_i32 = arith.constant 0 : i32
    %c0_i32_0 = arith.constant 0 : i32
    %c0_i32_1 = arith.constant 0 : i32
    return %c0_i32, %c0_i32_0 : i32, i32
  }
  func.func @transform_3(%arg0: i32) -> (i32, i32) {
    %c0_i32 = arith.constant 0 : i32
    %c0_i32_0 = arith.constant 0 : i32
    %c0_i32_1 = arith.constant 0 : i32
    return %c0_i32, %c0_i32_0 : i32, i32
  }
  func.func @transform_4(%arg0: i32) -> (i32, i32) {
    %c0_i32 = arith.constant 0 : i32
    %c0_i32_0 = arith.constant 0 : i32
    %c0_i32_1 = arith.constant 0 : i32
    return %c0_i32, %c0_i32_0 : i32, i32
  }
  func.func @transform_5(%arg0: i32) -> (i32, i32) {
    %c0_i32 = arith.constant 0 : i32
    %c0_i32_0 = arith.constant 0 : i32
    %c0_i32_1 = arith.constant 0 : i32
    return %c0_i32, %c0_i32_0 : i32, i32
  }
  func.func @transform_6(%arg0: i32) -> (i32, i32) {
    %c0_i32 = arith.constant 0 : i32
    %c0_i32_0 = arith.constant 0 : i32
    %c0_i32_1 = arith.constant 0 : i32
    return %c0_i32, %c0_i32_0 : i32, i32
  }
}

</mosaic_0001>

<llo_original>
// kernel: forward.1
$region0: #{forward.1}
  #allocation0 [shape = 'u32[]', space=smem, size = 0x4, offset = 0x4, fixed_abs, tag = 'smem constant byte address 0x4 - core index']
  #allocation1 [shape = 'u32[144,128]{1,0:T(1,128)}', space=vmem, size = 0x12000, scoped, tag = 'internal scratch']
  #allocation2 [shape = 'f32[17,512]{1,0:T(8,128)}', space=vmem, size = 0xc000, scoped, tag = 'scratch operand']
  #allocation3 [shape = 'f32[17,512]{1,0:T(8,128)}', space=vmem, size = 0xc000, scoped, tag = 'scratch operand']
  %s0 = inlined_call_operand.vmem [shape: f32[384,32], index: 0, kind: input, shape index: {}]
  %s1 = inlined_call_operand.vmem [shape: f32[17,17], index: 1, kind: input, shape index: {}]
  %s2 = inlined_call_operand.vmem [shape: bf16[32,64], index: 2, kind: input, shape index: {}]
  %s3 = inlined_call_operand.vmem [shape: f32[1,64], index: 3, kind: input, shape index: {}]
  %s4 = inlined_call_operand.vmem [shape: f32[17,1], index: 4, kind: input, shape index: {}]
  %s5 = inlined_call_operand.vmem [shape: f32[17,1], index: 5, kind: input, shape index: {}]
  %s6 = inlined_call_operand.vmem [shape: f32[17,512], index: 6, kind: output, shape index: {}]
  %s7 = sld [smem:[#allocation0]]
  $region34: #{forward.1} parent=0
    _
  %s9 = ssub.s32 1, %s7
  %s10 = scalar_select 0, %s9, %s7
  // Predicated region
  $region2: #{forward.1} parent=0 // pred_check
    _
  $region3: #{forward.1} parent=0 // pred_check_branch
    %12 = sbr.rel (0) target = $region5
  $region4: #{forward.1} parent=0 // pred_region
    _
  $region5: #{forward.1} parent=0 // pred_fallthru
    _
  // Predicated region
  $region6: #{forward.1} parent=0 // pred_check
    _
  $region7: #{forward.1} parent=0 // pred_check_branch
    %14 = sbr.rel (0) target = $region9
  $region8: #{forward.1} parent=0 // pred_region
    _
  $region9: #{forward.1} parent=0 // pred_fallthru
    _
  // Predicated region
  $region10: #{forward.1} parent=0 // pred_check
    _
  $region11: #{forward.1} parent=0 // pred_check_branch
    %16 = sbr.rel (0) target = $region13
  $region12: #{forward.1} parent=0 // pred_region
    _
  $region13: #{forward.1} parent=0 // pred_fallthru
    _
  // Predicated region
  $region14: #{forward.1} parent=0 // pred_check
    _
  $region15: #{forward.1} parent=0 // pred_check_branch
    %18 = sbr.rel (0) target = $region17
  $region16: #{forward.1} parent=0 // pred_region
    _
  $region17: #{forward.1} parent=0 // pred_fallthru
    _
  // Predicated region
  $region18: #{forward.1} parent=0 // pred_check
    _
  $region19: #{forward.1} parent=0 // pred_check_branch
    %20 = sbr.rel (0) target = $region21
  $region20: #{forward.1} parent=0 // pred_region
    _
  $region21: #{forward.1} parent=0 // pred_fallthru
    _
  // Predicated region
  $region22: #{forward.1} parent=0 // pred_check
    _
  $region23: #{forward.1} parent=0 // pred_check_branch
    %22 = sbr.rel (0) target = $region25
  $region24: #{forward.1} parent=0 // pred_region
    _
  $region25: #{forward.1} parent=0 // pred_fallthru
    _
  %v24 = vld [vmem:[%s0] sm:$0xff]
  %v25 = vld [vmem:[%s0 + $0x8] sm:$0xff]
  %v26 = vld [vmem:[%s0 + $0x10] sm:$0xff]
  %v27 = vld [vmem:[%s0 + $0x18] sm:$0xff]
  %v28 = vld [vmem:[%s0 + $0x20] sm:$0xff]
  %v29 = vld [vmem:[%s0 + $0x28] sm:$0xff]
  %v30 = vld [vmem:[%s0 + $0x30] sm:$0xff]
  %v31 = vld [vmem:[%s0 + $0x38] sm:$0xff]
  %v32 = vld [vmem:[%s0 + $0x40] sm:$0xff]
  %v33 = vld [vmem:[%s0 + $0x48] sm:$0xff]
  %v34 = vld [vmem:[%s0 + $0x50] sm:$0xff]
  %v35 = vld [vmem:[%s0 + $0x58] sm:$0xff]
  %v36 = vld [vmem:[%s0 + $0x60] sm:$0xff]
  %v37 = vld [vmem:[%s0 + $0x68] sm:$0xff]
  %v38 = vld [vmem:[%s0 + $0x70] sm:$0xff]
  %v39 = vld [vmem:[%s0 + $0x78] sm:$0xff]
  %v40 = vld [vmem:[%s0 + $0x80] sm:$0xff]
  %v41 = vld [vmem:[%s0 + $0x88] sm:$0xff]
  %v42 = vld [vmem:[%s0 + $0x90] sm:$0xff]
  %v43 = vld [vmem:[%s0 + $0x98] sm:$0xff]
  %v44 = vld [vmem:[%s0 + $0xa0] sm:$0xff]
  %v45 = vld [vmem:[%s0 + $0xa8] sm:$0xff]
  %v46 = vld [vmem:[%s0 + $0xb0] sm:$0xff]
  %v47 = vld [vmem:[%s0 + $0xb8] sm:$0xff]
  %v48 = vld [vmem:[%s0 + $0xc0] sm:$0xff]
  %v49 = vld [vmem:[%s0 + $0xc8] sm:$0xff]
  %v50 = vld [vmem:[%s0 + $0xd0] sm:$0xff]
  %v51 = vld [vmem:[%s0 + $0xd8] sm:$0xff]
  %v52 = vld [vmem:[%s0 + $0xe0] sm:$0xff]
  %v53 = vld [vmem:[%s0 + $0xe8] sm:$0xff]
  %v54 = vld [vmem:[%s0 + $0xf0] sm:$0xff]
  %v55 = vld [vmem:[%s0 + $0xf8] sm:$0xff]
  %v56 = vld [vmem:[%s0 + $0x100] sm:$0xff]
  %v57 = vld [vmem:[%s0 + $0x108] sm:$0xff]
  %v58 = vld [vmem:[%s0 + $0x110] sm:$0xff]
  %v59 = vld [vmem:[%s0 + $0x118] sm:$0xff]
  %v60 = vld [vmem:[%s0 + $0x120] sm:$0xff]
  %v61 = vld [vmem:[%s0 + $0x128] sm:$0xff]
  %v62 = vld [vmem:[%s0 + $0x130] sm:$0xff]
  %v63 = vld [vmem:[%s0 + $0x138] sm:$0xff]
  %v64 = vld [vmem:[%s0 + $0x140] sm:$0xff]
  %v65 = vld [vmem:[%s0 + $0x148] sm:$0xff]
  %v66 = vld [vmem:[%s0 + $0x150] sm:$0xff]
  %v67 = vld [vmem:[%s0 + $0x158] sm:$0xff]
  %v68 = vld [vmem:[%s0 + $0x160] sm:$0xff]
  %v69 = vld [vmem:[%s0 + $0x168] sm:$0xff]
  %v70 = vld [vmem:[%s0 + $0x170] sm:$0xff]
  %v71 = vld [vmem:[%s0 + $0x178] sm:$0xff]
  %v72 = vpack.c.bf16 %v25, %v24
  %v73 = vpack.c.bf16 %v27, %v26
  %v74 = vpack.c.bf16 %v29, %v28
  %v75 = vpack.c.bf16 %v31, %v30
  %v76 = vpack.c.bf16 %v33, %v32
  %v77 = vpack.c.bf16 %v35, %v34
  %v78 = vpack.c.bf16 %v37, %v36
  %v79 = vpack.c.bf16 %v39, %v38
  %v80 = vpack.c.bf16 %v41, %v40
  %v81 = vpack.c.bf16 %v43, %v42
  %v82 = vpack.c.bf16 %v45, %v44
  %v83 = vpack.c.bf16 %v47, %v46
  %v84 = vpack.c.bf16 %v49, %v48
  %v85 = vpack.c.bf16 %v51, %v50
  %v86 = vpack.c.bf16 %v53, %v52
  %v87 = vpack.c.bf16 %v55, %v54
  %v88 = vpack.c.bf16 %v57, %v56
  %v89 = vpack.c.bf16 %v59, %v58
  %v90 = vpack.c.bf16 %v61, %v60
  %v91 = vpack.c.bf16 %v63, %v62
  %v92 = vpack.c.bf16 %v65, %v64
  %v93 = vpack.c.bf16 %v67, %v66
  %v94 = vpack.c.bf16 %v69, %v68
  %v95 = vpack.c.bf16 %v71, %v70
  %v96 = vld [vmem:[%s2] sm:$0xf]
  %v97 = vld [vmem:[%s2 + $0x4] sm:$0xf]
  %v98 = vld [vmem:[%s2 + $0x8] sm:$0xf]
  %v99 = vld [vmem:[%s2 + $0xc] sm:$0xf]
  %v100 = vld [vmem:[%s3] sm:$0x1]
  %v102 = vlaneseq
  %v103 = vshrl.u32 %v102, 7
  %v104 = vsub.s32 0, %v103
  %v105 = vrot.slane %v100, %v104
  %v111 = vunpack.c.l.b16 %v96
  %v112 = vunpack.c.l.b16 %v97
  %v113 = vunpack.c.l.b16 %v98
  %v114 = vunpack.c.l.b16 %v99
  %v115 = vpack.c.b16 %v112, %v111
  %v116 = vpack.c.b16 %v114, %v113
  %vm119 = vcmask 261120
  %v121 = vsel %vm119, %v72, 0
  %v124 = vsel %vm119, %v73, 0
  %v127 = vsel %vm119, %v74, 0
  %v130 = vsel %vm119, %v75, 0
  %v133 = vsel %vm119, %v76, 0
  %v136 = vsel %vm119, %v77, 0
  %v139 = vsel %vm119, %v78, 0
  %v142 = vsel %vm119, %v79, 0
  %v145 = vsel %vm119, %v80, 0
  %v148 = vsel %vm119, %v81, 0
  %v151 = vsel %vm119, %v82, 0
  %v154 = vsel %vm119, %v83, 0
  %v157 = vsel %vm119, %v84, 0
  %v160 = vsel %vm119, %v85, 0
  %v163 = vsel %vm119, %v86, 0
  %v166 = vsel %vm119, %v87, 0
  %v169 = vsel %vm119, %v88, 0
  %v172 = vsel %vm119, %v89, 0
  %v175 = vsel %vm119, %v90, 0
  %v178 = vsel %vm119, %v91, 0
  %v181 = vsel %vm119, %v92, 0
  %v184 = vsel %vm119, %v93, 0
  %v187 = vsel %vm119, %v94, 0
  %v190 = vsel %vm119, %v95, 0
  %192 = vmatprep.subr.bf16.mxu0 0
  %193 = vmatpush1.bf16.msra.mxu0 0
  %194 = vmatprep.subr.bf16.mxu0 0
  %195 = vmatpush1.bf16.msra.mxu0 0
  %196 = vmatprep.subr.bf16.mxu0 0
  %197 = vmatpush1.bf16.msra.mxu0 0
  %198 = vmatprep.subr.bf16.mxu0 0
  %199 = vmatpush1.bf16.msra.mxu0 0
  %200 = vmatprep.subr.bf16.mxu0 0
  %201 = vmatpush1.bf16.msra.mxu0 0
  %202 = vmatprep.subr.bf16.mxu0 0
  %203 = vmatpush1.bf16.msra.mxu0 0
  %204 = vmatprep.subr.bf16.mxu0 0
  %205 = vmatpush1.bf16.msra.mxu0 %v116
  %206 = vmatprep.subr.bf16.mxu0 0
  %207 = vmatpush1.bf16.msra.mxu0 %v115
  %208 = vmatprep.subr.bf16.mxu0 0
  %209 = vmatpush2.bf16.msra.mxu0 0
  %210 = vmatprep.subr.bf16.mxu0 0
  %211 = vmatpush2.bf16.msra.mxu0 0
  %212 = vmatprep.subr.bf16.mxu0 0
  %213 = vmatpush2.bf16.msra.mxu0 0
  %214 = vmatprep.subr.bf16.mxu0 0
  %215 = vmatpush2.bf16.msra.mxu0 0
  %216 = vmatprep.subr.bf16.mxu0 0
  %217 = vmatpush2.bf16.msra.mxu0 0
  %218 = vmatprep.subr.bf16.mxu0 0
  %219 = vmatpush2.bf16.msra.mxu0 0
  %220 = vmatprep.subr.bf16.mxu0 0
  %221 = vmatpush2.bf16.msra.mxu0 0
  %222 = vmatprep.subr.bf16.mxu0 0
  %223 = vmatpush2.bf16.msra.mxu0 0
  %224 = vmatprep.mubr.bf16.mxu0 0
  %225 = vmatmul.mubr.bf16.gmra.mxu0 %v121
  %v226 = vpop.f32.mrf.mxu0
  %v227 = vadd.f32 %v105, %v226
  %v228 = vpop.f32.mrf.mxu0
  %v229 = vpop.f32.mrf.mxu0
  %v230 = vadd.f32 %v105, %v229
  %v231 = vpop.f32.mrf.mxu0
  %232 = vmatprep.mubr.bf16.mxu0 0
  %233 = vmatmul.mubr.bf16.gmra.mxu0 %v124
  %v234 = vpop.f32.mrf.mxu0
  %v235 = vadd.f32 %v105, %v234
  %v236 = vpop.f32.mrf.mxu0
  %v237 = vpop.f32.mrf.mxu0
  %v238 = vadd.f32 %v105, %v237
  %v239 = vpop.f32.mrf.mxu0
  %240 = vmatprep.mubr.bf16.mxu0 0
  %241 = vmatmul.mubr.bf16.gmra.mxu0 %v127
  %v242 = vpop.f32.mrf.mxu0
  %v243 = vadd.f32 %v105, %v242
  %v244 = vpop.f32.mrf.mxu0
  %v245 = vpop.f32.mrf.mxu0
  %v246 = vadd.f32 %v105, %v245
  %v247 = vpop.f32.mrf.mxu0
  %248 = vmatprep.mubr.bf16.mxu0 0
  %249 = vmatmul.mubr.bf16.gmra.mxu0 %v130
  %v250 = vpop.f32.mrf.mxu0
  %v251 = vadd.f32 %v105, %v250
  %v252 = vpop.f32.mrf.mxu0
  %v253 = vpop.f32.mrf.mxu0
  %v254 = vadd.f32 %v105, %v253
  %v255 = vpop.f32.mrf.mxu0
  %256 = vmatprep.mubr.bf16.mxu0 0
  %257 = vmatmul.mubr.bf16.gmra.mxu0 %v133
  %v258 = vpop.f32.mrf.mxu0
  %v259 = vadd.f32 %v105, %v258
  %v260 = vpop.f32.mrf.mxu0
  %v261 = vpop.f32.mrf.mxu0
  %v262 = vadd.f32 %v105, %v261
  %v263 = vpop.f32.mrf.mxu0
  %264 = vmatprep.mubr.bf16.mxu0 0
  %265 = vmatmul.mubr.bf16.gmra.mxu0 %v136
  %v266 = vpop.f32.mrf.mxu0
  %v267 = vadd.f32 %v105, %v266
  %v268 = vpop.f32.mrf.mxu0
  %v269 = vpop.f32.mrf.mxu0
  %v270 = vadd.f32 %v105, %v269
  %v271 = vpop.f32.mrf.mxu0
  %272 = vmatprep.mubr.bf16.mxu0 0
  %273 = vmatmul.mubr.bf16.gmra.mxu0 %v139
  %v274 = vpop.f32.mrf.mxu0
  %v275 = vadd.f32 %v105, %v274
  %v276 = vpop.f32.mrf.mxu0
  %v277 = vpop.f32.mrf.mxu0
  %v278 = vadd.f32 %v105, %v277
  %v279 = vpop.f32.mrf.mxu0
  %280 = vmatprep.mubr.bf16.mxu0 0
  %281 = vmatmul.mubr.bf16.gmra.mxu0 %v142
  %v282 = vpop.f32.mrf.mxu0
  %v283 = vadd.f32 %v105, %v282
  %v284 = vpop.f32.mrf.mxu0
  %v285 = vpop.f32.mrf.mxu0
  %v286 = vadd.f32 %v105, %v285
  %v287 = vpop.f32.mrf.mxu0
  %288 = vmatprep.mubr.bf16.mxu0 0
  %289 = vmatmul.mubr.bf16.gmra.mxu0 %v145
  %v290 = vpop.f32.mrf.mxu0
  %v291 = vadd.f32 %v105, %v290
  %v292 = vpop.f32.mrf.mxu0
  %v293 = vpop.f32.mrf.mxu0
  %v294 = vadd.f32 %v105, %v293
  %v295 = vpop.f32.mrf.mxu0
  %296 = vmatprep.mubr.bf16.mxu0 0
  %297 = vmatmul.mubr.bf16.gmra.mxu0 %v148
  %v298 = vpop.f32.mrf.mxu0
  %v299 = vadd.f32 %v105, %v298
  %v300 = vpop.f32.mrf.mxu0
  %v301 = vpop.f32.mrf.mxu0
  %v302 = vadd.f32 %v105, %v301
  %v303 = vpop.f32.mrf.mxu0
  %304 = vmatprep.mubr.bf16.mxu0 0
  %305 = vmatmul.mubr.bf16.gmra.mxu0 %v151
  %v306 = vpop.f32.mrf.mxu0
  %v307 = vadd.f32 %v105, %v306
  %v308 = vpop.f32.mrf.mxu0
  %v309 = vpop.f32.mrf.mxu0
  %v310 = vadd.f32 %v105, %v309
  %v311 = vpop.f32.mrf.mxu0
  %312 = vmatprep.mubr.bf16.mxu0 0
  %313 = vmatmul.mubr.bf16.gmra.mxu0 %v154
  %v314 = vpop.f32.mrf.mxu0
  %v315 = vadd.f32 %v105, %v314
  %v316 = vpop.f32.mrf.mxu0
  %v317 = vpop.f32.mrf.mxu0
  %v318 = vadd.f32 %v105, %v317
  %v319 = vpop.f32.mrf.mxu0
  %320 = vmatprep.mubr.bf16.mxu0 0
  %321 = vmatmul.mubr.bf16.gmra.mxu0 %v157
  %v322 = vpop.f32.mrf.mxu0
  %v323 = vadd.f32 %v105, %v322
  %v324 = vpop.f32.mrf.mxu0
  %v325 = vpop.f32.mrf.mxu0
  %v326 = vadd.f32 %v105, %v325
  %v327 = vpop.f32.mrf.mxu0
  %328 = vmatprep.mubr.bf16.mxu0 0
  %329 = vmatmul.mubr.bf16.gmra.mxu0 %v160
  %v330 = vpop.f32.mrf.mxu0
  %v331 = vadd.f32 %v105, %v330
  %v332 = vpop.f32.mrf.mxu0
  %v333 = vpop.f32.mrf.mxu0
  %v334 = vadd.f32 %v105, %v333
  %v335 = vpop.f32.mrf.mxu0
  %336 = vmatprep.mubr.bf16.mxu0 0
  %337 = vmatmul.mubr.bf16.gmra.mxu0 %v163
  %v338 = vpop.f32.mrf.mxu0
  %v339 = vadd.f32 %v105, %v338
  %v340 = vpop.f32.mrf.mxu0
  %v341 = vpop.f32.mrf.mxu0
  %v342 = vadd.f32 %v105, %v341
  %v343 = vpop.f32.mrf.mxu0
  %344 = vmatprep.mubr.bf16.mxu0 0
  %345 = vmatmul.mubr.bf16.gmra.mxu0 %v166
  %v346 = vpop.f32.mrf.mxu0
  %v347 = vadd.f32 %v105, %v346
  %v348 = vpop.f32.mrf.mxu0
  %v349 = vpop.f32.mrf.mxu0
  %v350 = vadd.f32 %v105, %v349
  %v351 = vpop.f32.mrf.mxu0
  %352 = vmatprep.mubr.bf16.mxu0 0
  %353 = vmatmul.mubr.bf16.gmra.mxu0 %v169
  %v354 = vpop.f32.mrf.mxu0
  %v355 = vadd.f32 %v105, %v354
  %v356 = vpop.f32.mrf.mxu0
  %v357 = vpop.f32.mrf.mxu0
  %v358 = vadd.f32 %v105, %v357
  %v359 = vpop.f32.mrf.mxu0
  %360 = vmatprep.mubr.bf16.mxu0 0
  %361 = vmatmul.mubr.bf16.gmra.mxu0 %v172
  %v362 = vpop.f32.mrf.mxu0
  %v363 = vadd.f32 %v105, %v362
  %v364 = vpop.f32.mrf.mxu0
  %v365 = vpop.f32.mrf.mxu0
  %v366 = vadd.f32 %v105, %v365
  %v367 = vpop.f32.mrf.mxu0
  %368 = vmatprep.mubr.bf16.mxu0 0
  %369 = vmatmul.mubr.bf16.gmra.mxu0 %v175
  %v370 = vpop.f32.mrf.mxu0
  %v371 = vadd.f32 %v105, %v370
  %v372 = vpop.f32.mrf.mxu0
  %v373 = vpop.f32.mrf.mxu0
  %v374 = vadd.f32 %v105, %v373
  %v375 = vpop.f32.mrf.mxu0
  %376 = vmatprep.mubr.bf16.mxu0 0
  %377 = vmatmul.mubr.bf16.gmra.mxu0 %v178
  %v378 = vpop.f32.mrf.mxu0
  %v379 = vadd.f32 %v105, %v378
  %v380 = vpop.f32.mrf.mxu0
  %v381 = vpop.f32.mrf.mxu0
  %v382 = vadd.f32 %v105, %v381
  %v383 = vpop.f32.mrf.mxu0
  %384 = vmatprep.mubr.bf16.mxu0 0
  %385 = vmatmul.mubr.bf16.gmra.mxu0 %v181
  %v386 = vpop.f32.mrf.mxu0
  %v387 = vadd.f32 %v105, %v386
  %v388 = vpop.f32.mrf.mxu0
  %v389 = vpop.f32.mrf.mxu0
  %v390 = vadd.f32 %v105, %v389
  %v391 = vpop.f32.mrf.mxu0
  %392 = vmatprep.mubr.bf16.mxu0 0
  %393 = vmatmul.mubr.bf16.gmra.mxu0 %v184
  %v394 = vpop.f32.mrf.mxu0
  %v395 = vadd.f32 %v105, %v394
  %v396 = vpop.f32.mrf.mxu0
  %v397 = vpop.f32.mrf.mxu0
  %v398 = vadd.f32 %v105, %v397
  %v399 = vpop.f32.mrf.mxu0
  %400 = vmatprep.mubr.bf16.mxu0 0
  %401 = vmatmul.mubr.bf16.gmra.mxu0 %v187
  %v402 = vpop.f32.mrf.mxu0
  %v403 = vadd.f32 %v105, %v402
  %v404 = vpop.f32.mrf.mxu0
  %v405 = vpop.f32.mrf.mxu0
  %v406 = vadd.f32 %v105, %v405
  %v407 = vpop.f32.mrf.mxu0
  %408 = vmatprep.mubr.bf16.mxu0 0
  %409 = vmatmul.mubr.bf16.gmra.mxu0 %v190
  %v410 = vpop.f32.mrf.mxu0
  %v411 = vadd.f32 %v105, %v410
  %v412 = vpop.f32.mrf.mxu0
  %v413 = vpop.f32.mrf.mxu0
  %v414 = vadd.f32 %v105, %v413
  %v415 = vpop.f32.mrf.mxu0
  %416 = vdwg.mxu0
  %417 = vst.msk [vmem:[#allocation2] sm:$0xff] %vm119, %v227
  %418 = vst.msk [vmem:[#allocation2 + $0x20] sm:$0xff] %vm119, %v230
  %vm419 = vcmask 253952
  %420 = vst.msk [vmem:[#allocation2 + $0x40] sm:$0x1] %vm419, %v235
  %424 = vrot.lane.b32.xlu0 %v227, 96
  %v425 = vpop.permute.xlu0 %424
  %426 = vrot.lane.b32.xlu0 %v230, 96
  %v427 = vpop.permute.xlu0 %426
  %428 = vrot.lane.b32.xlu0 %v235, 96
  %v429 = vpop.permute.xlu0 %428
  %433 = vst.msk [vmem:[#allocation3] sm:$0xff] %vm119, %v425
  %434 = vst.msk [vmem:[#allocation3 + $0x20] sm:$0xff] %vm119, %v427
  %435 = vst.msk [vmem:[#allocation3 + $0x40] sm:$0x1] %vm419, %v429
  %v436 = vld [vmem:[%s0] sm:$0xff]
  %v437 = vld [vmem:[%s0 + $0x8] sm:$0xff]
  %v438 = vld [vmem:[%s0 + $0x10] sm:$0x1]
  %439 = vst.msk [vmem:[%s6] sm:$0xff] %vm119, %v436
  %440 = vst.msk [vmem:[%s6 + $0x20] sm:$0xff] %vm119, %v437
  %441 = vst.msk [vmem:[%s6 + $0x40] sm:$0x1] %vm419, %v438
  %445 = vrot.lane.b32.xlu0 %v238, 32
  %v446 = vpop.permute.xlu0 %445
  %447 = vrot.lane.b32.xlu0 %v243, 32
  %v448 = vpop.permute.xlu0 %447
  %449 = vrot.lane.b32.xlu0 %v246, 32
  %v450 = vpop.permute.xlu0 %449
  %vm454 = vcmask 523520
  %455 = vst.msk [vmem:[#allocation2] sm:$0xff] %vm454, %v446
  %456 = vst.msk [vmem:[#allocation2 + $0x20] sm:$0xff] %vm454, %v448
  %vm457 = vcmask 516352
  %458 = vst.msk [vmem:[#allocation2 + $0x40] sm:$0x1] %vm457, %v450
  %459 = vst.msk [vmem:[#allocation3] sm:$0xff] %vm454, %v238
  %460 = vst.msk [vmem:[#allocation3 + $0x20] sm:$0xff] %vm454, %v243
  %461 = vst.msk [vmem:[#allocation3 + $0x40] sm:$0x1] %vm457, %v246
  %v462 = vld [vmem:[%s0 + $0x18] sm:$0xff]
  %v463 = vld [vmem:[%s0 + $0x20] sm:$0xff]
  %v464 = vld [vmem:[%s0 + $0x28] sm:$0x1]
  %468 = vrot.lane.b32.xlu0 %v462, 32
  %v469 = vpop.permute.xlu0 %468
  %470 = vrot.lane.b32.xlu0 %v463, 32
  %v471 = vpop.permute.xlu0 %470
  %472 = vrot.lane.b32.xlu0 %v464, 32
  %v473 = vpop.permute.xlu0 %472
  %477 = vst.msk [vmem:[%s6] sm:$0xff] %vm454, %v469
  %478 = vst.msk [vmem:[%s6 + $0x20] sm:$0xff] %vm454, %v471
  %479 = vst.msk [vmem:[%s6 + $0x40] sm:$0x1] %vm457, %v473
  %483 = vrot.lane.b32.xlu0 %v251, 64
  %v484 = vpop.permute.xlu0 %483
  %485 = vrot.lane.b32.xlu0 %v254, 64
  %v486 = vpop.permute.xlu0 %485
  %487 = vrot.lane.b32.xlu0 %v259, 64
  %v488 = vpop.permute.xlu0 %487
  %vm492 = vcmask 785920
  %493 = vst.msk [vmem:[#allocation2] sm:$0xff] %vm492, %v484
  %494 = vst.msk [vmem:[#allocation2 + $0x20] sm:$0xff] %vm492, %v486
  %vm495 = vcmask 778752
  %496 = vst.msk [vmem:[#allocation2 + $0x40] sm:$0x1] %vm495, %v488
  %497 = vrot.lane.b32.xlu0 %v251, 32
  %v498 = vpop.permute.xlu0 %497
  %499 = vrot.lane.b32.xlu0 %v254, 32
  %v500 = vpop.permute.xlu0 %499
  %501 = vrot.lane.b32.xlu0 %v259, 32
  %v502 = vpop.permute.xlu0 %501
  %506 = vst.msk [vmem:[#allocation3] sm:$0xff] %vm492, %v498
  %507 = vst.msk [vmem:[#allocation3 + $0x20] sm:$0xff] %vm492, %v500
  %508 = vst.msk [vmem:[#allocation3 + $0x40] sm:$0x1] %vm495, %v502
  %v509 = vld [vmem:[%s0 + $0x30] sm:$0xff]
  %v510 = vld [vmem:[%s0 + $0x38] sm:$0xff]
  %v511 = vld [vmem:[%s0 + $0x40] sm:$0x1]
  %515 = vrot.lane.b32.xlu0 %v509, 64
  %v516 = vpop.permute.xlu0 %515
  %517 = vrot.lane.b32.xlu0 %v510, 64
  %v518 = vpop.permute.xlu0 %517
  %519 = vrot.lane.b32.xlu0 %v511, 64
  %v520 = vpop.permute.xlu0 %519
  %524 = vst.msk [vmem:[%s6] sm:$0xff] %vm492, %v516
  %525 = vst.msk [vmem:[%s6 + $0x20] sm:$0xff] %vm492, %v518
  %526 = vst.msk [vmem:[%s6 + $0x40] sm:$0x1] %vm495, %v520
  %530 = vrot.lane.b32.xlu0 %v262, 96
  %v531 = vpop.permute.xlu0 %530
  %532 = vrot.lane.b32.xlu0 %v267, 96
  %v533 = vpop.permute.xlu0 %532
  %534 = vrot.lane.b32.xlu0 %v270, 96
  %v535 = vpop.permute.xlu0 %534
  %vm539 = vcmask 1048320
  %540 = vst.msk [vmem:[#allocation2] sm:$0xff] %vm539, %v531
  %541 = vst.msk [vmem:[#allocation2 + $0x20] sm:$0xff] %vm539, %v533
  %vm542 = vcmask 1041152
  %543 = vst.msk [vmem:[#allocation2 + $0x40] sm:$0x1] %vm542, %v535
  %544 = vrot.lane.b32.xlu0 %v262, 64
  %v545 = vpop.permute.xlu0 %544
  %546 = vrot.lane.b32.xlu0 %v267, 64
  %v547 = vpop.permute.xlu0 %546
  %548 = vrot.lane.b32.xlu0 %v270, 64
  %v549 = vpop.permute.xlu0 %548
  %553 = vst.msk [vmem:[#allocation3] sm:$0xff] %vm539, %v545
  %554 = vst.msk [vmem:[#allocation3 + $0x20] sm:$0xff] %vm539, %v547
  %555 = vst.msk [vmem:[#allocation3 + $0x40] sm:$0x1] %vm542, %v549
  %v556 = vld [vmem:[%s0 + $0x48] sm:$0xff]
  %v557 = vld [vmem:[%s0 + $0x50] sm:$0xff]
  %v558 = vld [vmem:[%s0 + $0x58] sm:$0x1]
  %562 = vrot.lane.b32.xlu0 %v556, 96
  %v563 = vpop.permute.xlu0 %562
  %564 = vrot.lane.b32.xlu0 %v557, 96
  %v565 = vpop.permute.xlu0 %564
  %566 = vrot.lane.b32.xlu0 %v558, 96
  %v567 = vpop.permute.xlu0 %566
  %571 = vst.msk [vmem:[%s6] sm:$0xff] %vm539, %v563
  %572 = vst.msk [vmem:[%s6 + $0x20] sm:$0xff] %vm539, %v565
  %573 = vst.msk [vmem:[%s6 + $0x40] sm:$0x1] %vm542, %v567
  %574 = vst.msk [vmem:[#allocation2 + $0x8] sm:$0xff] %vm119, %v275
  %575 = vst.msk [vmem:[#allocation2 + $0x28] sm:$0xff] %vm119, %v278
  %576 = vst.msk [vmem:[#allocation2 + $0x48] sm:$0x1] %vm419, %v283
  %580 = vrot.lane.b32.xlu0 %v275, 96
  %v581 = vpop.permute.xlu0 %580
  %582 = vrot.lane.b32.xlu0 %v278, 96
  %v583 = vpop.permute.xlu0 %582
  %584 = vrot.lane.b32.xlu0 %v283, 96
  %v585 = vpop.permute.xlu0 %584
  %589 = vst.msk [vmem:[#allocation3 + $0x8] sm:$0xff] %vm119, %v581
  %590 = vst.msk [vmem:[#allocation3 + $0x28] sm:$0xff] %vm119, %v583
  %591 = vst.msk [vmem:[#allocation3 + $0x48] sm:$0x1] %vm419, %v585
  %v592 = vld [vmem:[%s0 + $0x60] sm:$0xff]
  %v593 = vld [vmem:[%s0 + $0x68] sm:$0xff]
  %v594 = vld [vmem:[%s0 + $0x70] sm:$0x1]
  %595 = vst.msk [vmem:[%s6 + $0x8] sm:$0xff] %vm119, %v592
  %596 = vst.msk [vmem:[%s6 + $0x28] sm:$0xff] %vm119, %v593
  %597 = vst.msk [vmem:[%s6 + $0x48] sm:$0x1] %vm419, %v594
  %601 = vrot.lane.b32.xlu0 %v286, 32
  %v602 = vpop.permute.xlu0 %601
  %603 = vrot.lane.b32.xlu0 %v291, 32
  %v604 = vpop.permute.xlu0 %603
  %605 = vrot.lane.b32.xlu0 %v294, 32
  %v606 = vpop.permute.xlu0 %605
  %610 = vst.msk [vmem:[#allocation2 + $0x8] sm:$0xff] %vm454, %v602
  %611 = vst.msk [vmem:[#allocation2 + $0x28] sm:$0xff] %vm454, %v604
  %612 = vst.msk [vmem:[#allocation2 + $0x48] sm:$0x1] %vm457, %v606
  %613 = vst.msk [vmem:[#allocation3 + $0x8] sm:$0xff] %vm454, %v286
  %614 = vst.msk [vmem:[#allocation3 + $0x28] sm:$0xff] %vm454, %v291
  %615 = vst.msk [vmem:[#allocation3 + $0x48] sm:$0x1] %vm457, %v294
  %v616 = vld [vmem:[%s0 + $0x78] sm:$0xff]
  %v617 = vld [vmem:[%s0 + $0x80] sm:$0xff]
  %v618 = vld [vmem:[%s0 + $0x88] sm:$0x1]
  %622 = vrot.lane.b32.xlu0 %v616, 32
  %v623 = vpop.permute.xlu0 %622
  %624 = vrot.lane.b32.xlu0 %v617, 32
  %v625 = vpop.permute.xlu0 %624
  %626 = vrot.lane.b32.xlu0 %v618, 32
  %v627 = vpop.permute.xlu0 %626
  %631 = vst.msk [vmem:[%s6 + $0x8] sm:$0xff] %vm454, %v623
  %632 = vst.msk [vmem:[%s6 + $0x28] sm:$0xff] %vm454, %v625
  %633 = vst.msk [vmem:[%s6 + $0x48] sm:$0x1] %vm457, %v627
  %637 = vrot.lane.b32.xlu0 %v299, 64
  %v638 = vpop.permute.xlu0 %637
  %639 = vrot.lane.b32.xlu0 %v302, 64
  %v640 = vpop.permute.xlu0 %639
  %641 = vrot.lane.b32.xlu0 %v307, 64
  %v642 = vpop.permute.xlu0 %641
  %646 = vst.msk [vmem:[#allocation2 + $0x8] sm:$0xff] %vm492, %v638
  %647 = vst.msk [vmem:[#allocation2 + $0x28] sm:$0xff] %vm492, %v640
  %648 = vst.msk [vmem:[#allocation2 + $0x48] sm:$0x1] %vm495, %v642
  %649 = vrot.lane.b32.xlu0 %v299, 32
  %v650 = vpop.permute.xlu0 %649
  %651 = vrot.lane.b32.xlu0 %v302, 32
  %v652 = vpop.permute.xlu0 %651
  %653 = vrot.lane.b32.xlu0 %v307, 32
  %v654 = vpop.permute.xlu0 %653
  %658 = vst.msk [vmem:[#allocation3 + $0x8] sm:$0xff] %vm492, %v650
  %659 = vst.msk [vmem:[#allocation3 + $0x28] sm:$0xff] %vm492, %v652
  %660 = vst.msk [vmem:[#allocation3 + $0x48] sm:$0x1] %vm495, %v654
  %v661 = vld [vmem:[%s0 + $0x90] sm:$0xff]
  %v662 = vld [vmem:[%s0 + $0x98] sm:$0xff]
  %v663 = vld [vmem:[%s0 + $0xa0] sm:$0x1]
  %667 = vrot.lane.b32.xlu0 %v661, 64
  %v668 = vpop.permute.xlu0 %667
  %669 = vrot.lane.b32.xlu0 %v662, 64
  %v670 = vpop.permute.xlu0 %669
  %671 = vrot.lane.b32.xlu0 %v663, 64
  %v672 = vpop.permute.xlu0 %671
  %676 = vst.msk [vmem:[%s6 + $0x8] sm:$0xff] %vm492, %v668
  %677 = vst.msk [vmem:[%s6 + $0x28] sm:$0xff] %vm492, %v670
  %678 = vst.msk [vmem:[%s6 + $0x48] sm:$0x1] %vm495, %v672
  %682 = vrot.lane.b32.xlu0 %v310, 96
  %v683 = vpop.permute.xlu0 %682
  %684 = vrot.lane.b32.xlu0 %v315, 96
  %v685 = vpop.permute.xlu0 %684
  %686 = vrot.lane.b32.xlu0 %v318, 96
  %v687 = vpop.permute.xlu0 %686
  %691 = vst.msk [vmem:[#allocation2 + $0x8] sm:$0xff] %vm539, %v683
  %692 = vst.msk [vmem:[#allocation2 + $0x28] sm:$0xff] %vm539, %v685
  %693 = vst.msk [vmem:[#allocation2 + $0x48] sm:$0x1] %vm542, %v687
  %694 = vrot.lane.b32.xlu0 %v310, 64
  %v695 = vpop.permute.xlu0 %694
  %696 = vrot.lane.b32.xlu0 %v315, 64
  %v697 = vpop.permute.xlu0 %696
  %698 = vrot.lane.b32.xlu0 %v318, 64
  %v699 = vpop.permute.xlu0 %698
  %703 = vst.msk [vmem:[#allocation3 + $0x8] sm:$0xff] %vm539, %v695
  %704 = vst.msk [vmem:[#allocation3 + $0x28] sm:$0xff] %vm539, %v697
  %705 = vst.msk [vmem:[#allocation3 + $0x48] sm:$0x1] %vm542, %v699
  %v706 = vld [vmem:[%s0 + $0xa8] sm:$0xff]
  %v707 = vld [vmem:[%s0 + $0xb0] sm:$0xff]
  %v708 = vld [vmem:[%s0 + $0xb8] sm:$0x1]
  %712 = vrot.lane.b32.xlu0 %v706, 96
  %v713 = vpop.permute.xlu0 %712
  %714 = vrot.lane.b32.xlu0 %v707, 96
  %v715 = vpop.permute.xlu0 %714
  %716 = vrot.lane.b32.xlu0 %v708, 96
  %v717 = vpop.permute.xlu0 %716
  %721 = vst.msk [vmem:[%s6 + $0x8] sm:$0xff] %vm539, %v713
  %722 = vst.msk [vmem:[%s6 + $0x28] sm:$0xff] %vm539, %v715
  %723 = vst.msk [vmem:[%s6 + $0x48] sm:$0x1] %vm542, %v717
  %724 = vst.msk [vmem:[#allocation2 + $0x10] sm:$0xff] %vm119, %v323
  %725 = vst.msk [vmem:[#allocation2 + $0x30] sm:$0xff] %vm119, %v326
  %726 = vst.msk [vmem:[#allocation2 + $0x50] sm:$0x1] %vm419, %v331
  %730 = vrot.lane.b32.xlu0 %v323, 96
  %v731 = vpop.permute.xlu0 %730
  %732 = vrot.lane.b32.xlu0 %v326, 96
  %v733 = vpop.permute.xlu0 %732
  %734 = vrot.lane.b32.xlu0 %v331, 96
  %v735 = vpop.permute.xlu0 %734
  %739 = vst.msk [vmem:[#allocation3 + $0x10] sm:$0xff] %vm119, %v731
  %740 = vst.msk [vmem:[#allocation3 + $0x30] sm:$0xff] %vm119, %v733
  %741 = vst.msk [vmem:[#allocation3 + $0x50] sm:$0x1] %vm419, %v735
  %v742 = vld [vmem:[%s0 + $0xc0] sm:$0xff]
  %v743 = vld [vmem:[%s0 + $0xc8] sm:$0xff]
  %v744 = vld [vmem:[%s0 + $0xd0] sm:$0x1]
  %745 = vst.msk [vmem:[%s6 + $0x10] sm:$0xff] %vm119, %v742
  %746 = vst.msk [vmem:[%s6 + $0x30] sm:$0xff] %vm119, %v743
  %747 = vst.msk [vmem:[%s6 + $0x50] sm:$0x1] %vm419, %v744
  %751 = vrot.lane.b32.xlu0 %v334, 32
  %v752 = vpop.permute.xlu0 %751
  %753 = vrot.lane.b32.xlu0 %v339, 32
  %v754 = vpop.permute.xlu0 %753
  %755 = vrot.lane.b32.xlu0 %v342, 32
  %v756 = vpop.permute.xlu0 %755
  %760 = vst.msk [vmem:[#allocation2 + $0x10] sm:$0xff] %vm454, %v752
  %761 = vst.msk [vmem:[#allocation2 + $0x30] sm:$0xff] %vm454, %v754
  %762 = vst.msk [vmem:[#allocation2 + $0x50] sm:$0x1] %vm457, %v756
  %763 = vst.msk [vmem:[#allocation3 + $0x10] sm:$0xff] %vm454, %v334
  %764 = vst.msk [vmem:[#allocation3 + $0x30] sm:$0xff] %vm454, %v339
  %765 = vst.msk [vmem:[#allocation3 + $0x50] sm:$0x1] %vm457, %v342
  %v766 = vld [vmem:[%s0 + $0xd8] sm:$0xff]
  %v767 = vld [vmem:[%s0 + $0xe0] sm:$0xff]
  %v768 = vld [vmem:[%s0 + $0xe8] sm:$0x1]
  %772 = vrot.lane.b32.xlu0 %v766, 32
  %v773 = vpop.permute.xlu0 %772
  %774 = vrot.lane.b32.xlu0 %v767, 32
  %v775 = vpop.permute.xlu0 %774
  %776 = vrot.lane.b32.xlu0 %v768, 32
  %v777 = vpop.permute.xlu0 %776
  %781 = vst.msk [vmem:[%s6 + $0x10] sm:$0xff] %vm454, %v773
  %782 = vst.msk [vmem:[%s6 + $0x30] sm:$0xff] %vm454, %v775
  %783 = vst.msk [vmem:[%s6 + $0x50] sm:$0x1] %vm457, %v777
  %787 = vrot.lane.b32.xlu0 %v347, 64
  %v788 = vpop.permute.xlu0 %787
  %789 = vrot.lane.b32.xlu0 %v350, 64
  %v790 = vpop.permute.xlu0 %789
  %791 = vrot.lane.b32.xlu0 %v355, 64
  %v792 = vpop.permute.xlu0 %791
  %796 = vst.msk [vmem:[#allocation2 + $0x10] sm:$0xff] %vm492, %v788
  %797 = vst.msk [vmem:[#allocation2 + $0x30] sm:$0xff] %vm492, %v790
  %798 = vst.msk [vmem:[#allocation2 + $0x50] sm:$0x1] %vm495, %v792
  %799 = vrot.lane.b32.xlu0 %v347, 32
  %v800 = vpop.permute.xlu0 %799
  %801 = vrot.lane.b32.xlu0 %v350, 32
  %v802 = vpop.permute.xlu0 %801
  %803 = vrot.lane.b32.xlu0 %v355, 32
  %v804 = vpop.permute.xlu0 %803
  %808 = vst.msk [vmem:[#allocation3 + $0x10] sm:$0xff] %vm492, %v800
  %809 = vst.msk [vmem:[#allocation3 + $0x30] sm:$0xff] %vm492, %v802
  %810 = vst.msk [vmem:[#allocation3 + $0x50] sm:$0x1] %vm495, %v804
  %v811 = vld [vmem:[%s0 + $0xf0] sm:$0xff]
  %v812 = vld [vmem:[%s0 + $0xf8] sm:$0xff]
  %v813 = vld [vmem:[%s0 + $0x100] sm:$0x1]
  %817 = vrot.lane.b32.xlu0 %v811, 64
  %v818 = vpop.permute.xlu0 %817
  %819 = vrot.lane.b32.xlu0 %v812, 64
  %v820 = vpop.permute.xlu0 %819
  %821 = vrot.lane.b32.xlu0 %v813, 64
  %v822 = vpop.permute.xlu0 %821
  %826 = vst.msk [vmem:[%s6 + $0x10] sm:$0xff] %vm492, %v818
  %827 = vst.msk [vmem:[%s6 + $0x30] sm:$0xff] %vm492, %v820
  %828 = vst.msk [vmem:[%s6 + $0x50] sm:$0x1] %vm495, %v822
  %832 = vrot.lane.b32.xlu0 %v358, 96
  %v833 = vpop.permute.xlu0 %832
  %834 = vrot.lane.b32.xlu0 %v363, 96
  %v835 = vpop.permute.xlu0 %834
  %836 = vrot.lane.b32.xlu0 %v366, 96
  %v837 = vpop.permute.xlu0 %836
  %841 = vst.msk [vmem:[#allocation2 + $0x10] sm:$0xff] %vm539, %v833
  %842 = vst.msk [vmem:[#allocation2 + $0x30] sm:$0xff] %vm539, %v835
  %843 = vst.msk [vmem:[#allocation2 + $0x50] sm:$0x1] %vm542, %v837
  %844 = vrot.lane.b32.xlu0 %v358, 64
  %v845 = vpop.permute.xlu0 %844
  %846 = vrot.lane.b32.xlu0 %v363, 64
  %v847 = vpop.permute.xlu0 %846
  %848 = vrot.lane.b32.xlu0 %v366, 64
  %v849 = vpop.permute.xlu0 %848
  %853 = vst.msk [vmem:[#allocation3 + $0x10] sm:$0xff] %vm539, %v845
  %854 = vst.msk [vmem:[#allocation3 + $0x30] sm:$0xff] %vm539, %v847
  %855 = vst.msk [vmem:[#allocation3 + $0x50] sm:$0x1] %vm542, %v849
  %v856 = vld [vmem:[%s0 + $0x108] sm:$0xff]
  %v857 = vld [vmem:[%s0 + $0x110] sm:$0xff]
  %v858 = vld [vmem:[%s0 + $0x118] sm:$0x1]
  %862 = vrot.lane.b32.xlu0 %v856, 96
  %v863 = vpop.permute.xlu0 %862
  %864 = vrot.lane.b32.xlu0 %v857, 96
  %v865 = vpop.permute.xlu0 %864
  %866 = vrot.lane.b32.xlu0 %v858, 96
  %v867 = vpop.permute.xlu0 %866
  %871 = vst.msk [vmem:[%s6 + $0x10] sm:$0xff] %vm539, %v863
  %872 = vst.msk [vmem:[%s6 + $0x30] sm:$0xff] %vm539, %v865
  %873 = vst.msk [vmem:[%s6 + $0x50] sm:$0x1] %vm542, %v867
  %874 = vst.msk [vmem:[#allocation2 + $0x18] sm:$0xff] %vm119, %v371
  %875 = vst.msk [vmem:[#allocation2 + $0x38] sm:$0xff] %vm119, %v374
  %876 = vst.msk [vmem:[#allocation2 + $0x58] sm:$0x1] %vm419, %v379
  %880 = vrot.lane.b32.xlu0 %v371, 96
  %v881 = vpop.permute.xlu0 %880
  %882 = vrot.lane.b32.xlu0 %v374, 96
  %v883 = vpop.permute.xlu0 %882
  %884 = vrot.lane.b32.xlu0 %v379, 96
  %v885 = vpop.permute.xlu0 %884
  %889 = vst.msk [vmem:[#allocation3 + $0x18] sm:$0xff] %vm119, %v881
  %890 = vst.msk [vmem:[#allocation3 + $0x38] sm:$0xff] %vm119, %v883
  %891 = vst.msk [vmem:[#allocation3 + $0x58] sm:$0x1] %vm419, %v885
  %v892 = vld [vmem:[%s0 + $0x120] sm:$0xff]
  %v893 = vld [vmem:[%s0 + $0x128] sm:$0xff]
  %v894 = vld [vmem:[%s0 + $0x130] sm:$0x1]
  %895 = vst.msk [vmem:[%s6 + $0x18] sm:$0xff] %vm119, %v892
  %896 = vst.msk [vmem:[%s6 + $0x38] sm:$0xff] %vm119, %v893
  %897 = vst.msk [vmem:[%s6 + $0x58] sm:$0x1] %vm419, %v894
  %901 = vrot.lane.b32.xlu0 %v382, 32
  %v902 = vpop.permute.xlu0 %901
  %903 = vrot.lane.b32.xlu0 %v387, 32
  %v904 = vpop.permute.xlu0 %903
  %905 = vrot.lane.b32.xlu0 %v390, 32
  %v906 = vpop.permute.xlu0 %905
  %910 = vst.msk [vmem:[#allocation2 + $0x18] sm:$0xff] %vm454, %v902
  %911 = vst.msk [vmem:[#allocation2 + $0x38] sm:$0xff] %vm454, %v904
  %912 = vst.msk [vmem:[#allocation2 + $0x58] sm:$0x1] %vm457, %v906
  %913 = vst.msk [vmem:[#allocation3 + $0x18] sm:$0xff] %vm454, %v382
  %914 = vst.msk [vmem:[#allocation3 + $0x38] sm:$0xff] %vm454, %v387
  %915 = vst.msk [vmem:[#allocation3 + $0x58] sm:$0x1] %vm457, %v390
  %v916 = vld [vmem:[%s0 + $0x138] sm:$0xff]
  %v917 = vld [vmem:[%s0 + $0x140] sm:$0xff]
  %v918 = vld [vmem:[%s0 + $0x148] sm:$0x1]
  %922 = vrot.lane.b32.xlu0 %v916, 32
  %v923 = vpop.permute.xlu0 %922
  %924 = vrot.lane.b32.xlu0 %v917, 32
  %v925 = vpop.permute.xlu0 %924
  %926 = vrot.lane.b32.xlu0 %v918, 32
  %v927 = vpop.permute.xlu0 %926
  %931 = vst.msk [vmem:[%s6 + $0x18] sm:$0xff] %vm454, %v923
  %932 = vst.msk [vmem:[%s6 + $0x38] sm:$0xff] %vm454, %v925
  %933 = vst.msk [vmem:[%s6 + $0x58] sm:$0x1] %vm457, %v927
  %937 = vrot.lane.b32.xlu0 %v395, 64
  %v938 = vpop.permute.xlu0 %937
  %939 = vrot.lane.b32.xlu0 %v398, 64
  %v940 = vpop.permute.xlu0 %939
  %941 = vrot.lane.b32.xlu0 %v403, 64
  %v942 = vpop.permute.xlu0 %941
  %946 = vst.msk [vmem:[#allocation2 + $0x18] sm:$0xff] %vm492, %v938
  %947 = vst.msk [vmem:[#allocation2 + $0x38] sm:$0xff] %vm492, %v940
  %948 = vst.msk [vmem:[#allocation2 + $0x58] sm:$0x1] %vm495, %v942
  %949 = vrot.lane.b32.xlu0 %v395, 32
  %v950 = vpop.permute.xlu0 %949
  %951 = vrot.lane.b32.xlu0 %v398, 32
  %v952 = vpop.permute.xlu0 %951
  %953 = vrot.lane.b32.xlu0 %v403, 32
  %v954 = vpop.permute.xlu0 %953
  %958 = vst.msk [vmem:[#allocation3 + $0x18] sm:$0xff] %vm492, %v950
  %959 = vst.msk [vmem:[#allocation3 + $0x38] sm:$0xff] %vm492, %v952
  %960 = vst.msk [vmem:[#allocation3 + $0x58] sm:$0x1] %vm495, %v954
  %v961 = vld [vmem:[%s0 + $0x150] sm:$0xff]
  %v962 = vld [vmem:[%s0 + $0x158] sm:$0xff]
  %v963 = vld [vmem:[%s0 + $0x160] sm:$0x1]
  %967 = vrot.lane.b32.xlu0 %v961, 64
  %v968 = vpop.permute.xlu0 %967
  %969 = vrot.lane.b32.xlu0 %v962, 64
  %v970 = vpop.permute.xlu0 %969
  %971 = vrot.lane.b32.xlu0 %v963, 64
  %v972 = vpop.permute.xlu0 %971
  %976 = vst.msk [vmem:[%s6 + $0x18] sm:$0xff] %vm492, %v968
  %977 = vst.msk [vmem:[%s6 + $0x38] sm:$0xff] %vm492, %v970
  %978 = vst.msk [vmem:[%s6 + $0x58] sm:$0x1] %vm495, %v972
  %982 = vrot.lane.b32.xlu0 %v406, 96
  %v983 = vpop.permute.xlu0 %982
  %984 = vrot.lane.b32.xlu0 %v411, 96
  %v985 = vpop.permute.xlu0 %984
  %986 = vrot.lane.b32.xlu0 %v414, 96
  %v987 = vpop.permute.xlu0 %986
  %991 = vst.msk [vmem:[#allocation2 + $0x18] sm:$0xff] %vm539, %v983
  %992 = vst.msk [vmem:[#allocation2 + $0x38] sm:$0xff] %vm539, %v985
  %993 = vst.msk [vmem:[#allocation2 + $0x58] sm:$0x1] %vm542, %v987
  %994 = vrot.lane.b32.xlu0 %v406, 64
  %v995 = vpop.permute.xlu0 %994
  %996 = vrot.lane.b32.xlu0 %v411, 64
  %v997 = vpop.permute.xlu0 %996
  %998 = vrot.lane.b32.xlu0 %v414, 64
  %v999 = vpop.permute.xlu0 %998
  %1003 = vst.msk [vmem:[#allocation3 + $0x18] sm:$0xff] %vm539, %v995
  %1004 = vst.msk [vmem:[#allocation3 + $0x38] sm:$0xff] %vm539, %v997
  %1005 = vst.msk [vmem:[#allocation3 + $0x58] sm:$0x1] %vm542, %v999
  %v1006 = vld [vmem:[%s0 + $0x168] sm:$0xff]
  %v1007 = vld [vmem:[%s0 + $0x170] sm:$0xff]
  %v1008 = vld [vmem:[%s0 + $0x178] sm:$0x1]
  %1012 = vrot.lane.b32.xlu0 %v1006, 96
  %v1013 = vpop.permute.xlu0 %1012
  %1014 = vrot.lane.b32.xlu0 %v1007, 96
  %v1015 = vpop.permute.xlu0 %1014
  %1016 = vrot.lane.b32.xlu0 %v1008, 96
  %v1017 = vpop.permute.xlu0 %1016
  %1021 = vst.msk [vmem:[%s6 + $0x18] sm:$0xff] %vm539, %v1013
  %1022 = vst.msk [vmem:[%s6 + $0x38] sm:$0xff] %vm539, %v1015
  %1023 = vst.msk [vmem:[%s6 + $0x58] sm:$0x1] %vm542, %v1017
  %v1024 = vld [vmem:[%s1] sm:$0xff]
  %v1025 = vld [vmem:[%s1 + $0x8] sm:$0xff]
  %v1026 = vld [vmem:[%s1 + $0x10] sm:$0x1]
  %v1027 = vld [vmem:[#allocation2] sm:$0xff]
  %v1028 = vld [vmem:[#allocation2 + $0x8] sm:$0xff]
  %v1029 = vld [vmem:[#allocation2 + $0x10] sm:$0xff]
  %v1030 = vld [vmem:[#allocation2 + $0x18] sm:$0xff]
  %v1031 = vld [vmem:[#allocation2 + $0x20] sm:$0xff]
  %v1032 = vld [vmem:[#allocation2 + $0x28] sm:$0xff]
  %v1033 = vld [vmem:[#allocation2 + $0x30] sm:$0xff]
  %v1034 = vld [vmem:[#allocation2 + $0x38] sm:$0xff]
  %v1035 = vld [vmem:[#allocation2 + $0x40] sm:$0x1]
  %v1036 = vld [vmem:[#allocation2 + $0x48] sm:$0x1]
  %v1037 = vld [vmem:[#allocation2 + $0x50] sm:$0x1]
  %v1038 = vld [vmem:[#allocation2 + $0x58] sm:$0x1]
  %v1039 = vld [vmem:[#allocation3] sm:$0xff]
  %v1040 = vld [vmem:[#allocation3 + $0x8] sm:$0xff]
  %v1041 = vld [vmem:[#allocation3 + $0x10] sm:$0xff]
  %v1042 = vld [vmem:[#allocation3 + $0x18] sm:$0xff]
  %v1043 = vld [vmem:[#allocation3 + $0x20] sm:$0xff]
  %v1044 = vld [vmem:[#allocation3 + $0x28] sm:$0xff]
  %v1045 = vld [vmem:[#allocation3 + $0x30] sm:$0xff]
  %v1046 = vld [vmem:[#allocation3 + $0x38] sm:$0xff]
  %v1047 = vld [vmem:[#allocation3 + $0x40] sm:$0x1]
  %v1048 = vld [vmem:[#allocation3 + $0x48] sm:$0x1]
  %v1049 = vld [vmem:[#allocation3 + $0x50] sm:$0x1]
  %v1050 = vld [vmem:[#allocation3 + $0x58] sm:$0x1]
  %vm1051 = vcmask 138240
  %v1053 = vsel %vm1051, %v1024, 0
  %v1056 = vsel %vm1051, %v1025, 0
  %v1059 = vsel %vm1051, %v1026, 0
  %vm1061 = vcmask 1040384
  %v1063 = vsel %vm1061, %v1035, 0
  %v1066 = vsel %vm1061, %v1036, 0
  %v1069 = vsel %vm1061, %v1037, 0
  %v1072 = vsel %vm1061, %v1038, 0
  %1074 = vmatprep.subr.mxu0 0.0
  %1075 = vmatpush1.msra.mxu0 0.0
  %1076 = vmatprep.subr.mxu0 0.0
  %1077 = vmatpush1.msra.mxu0 0.0
  %1078 = vmatprep.subr.mxu0 0.0
  %1079 = vmatpush1.msra.mxu0 0.0
  %1080 = vmatprep.subr.mxu0 0.0
  %1081 = vmatpush1.msra.mxu0 0.0
  %1082 = vmatprep.subr.mxu0 0.0
  %1083 = vmatpush1.msra.mxu0 0.0
  %1084 = vmatprep.subr.mxu0 0.0
  %1085 = vmatpush1.msra.mxu0 0.0
  %1086 = vmatprep.subr.mxu0 0.0
  %1087 = vmatpush1.msra.mxu0 0.0
  %1088 = vmatprep.subr.mxu0 0.0
  %1089 = vmatpush1.msra.mxu0 0.0
  %1090 = vmatprep.subr.mxu0 0.0
  %1091 = vmatpush1.msra.mxu0 0.0
  %1092 = vmatprep.subr.mxu0 0.0
  %1093 = vmatpush1.msra.mxu0 0.0
  %1094 = vmatprep.subr.mxu0 0.0
  %1095 = vmatpush1.msra.mxu0 0.0
  %1096 = vmatprep.subr.mxu0 0.0
  %1097 = vmatpush1.msra.mxu0 0.0
  %1098 = vmatprep.subr.mxu0 0.0
  %1099 = vmatpush1.msra.mxu0 0.0
  %v1100 = vand.u32 %v1066, 4294901760
  %1101 = vmatprep.subr.mxu0 %v1100
  %v1102 = vand.u32 %v1063, 4294901760
  %1103 = vmatpush1.msra.mxu0 %v1102
  %v1104 = vand.u32 %v1032, 4294901760
  %1105 = vmatprep.subr.mxu0 %v1104
  %v1106 = vand.u32 %v1031, 4294901760
  %1107 = vmatpush1.msra.mxu0 %v1106
  %v1108 = vand.u32 %v1028, 4294901760
  %1109 = vmatprep.subr.mxu0 %v1108
  %v1110 = vand.u32 %v1027, 4294901760
  %1111 = vmatpush1.msra.mxu0 %v1110
  %1112 = vmatprep.subr.mxu0 0.0
  %1113 = vmatpush2.msra.mxu0 0.0
  %1114 = vmatprep.subr.mxu0 0.0
  %1115 = vmatpush2.msra.mxu0 0.0
  %1116 = vmatprep.subr.mxu0 0.0
  %1117 = vmatpush2.msra.mxu0 0.0
  %1118 = vmatprep.subr.mxu0 0.0
  %1119 = vmatpush2.msra.mxu0 0.0
  %1120 = vmatprep.subr.mxu0 0.0
  %1121 = vmatpush2.msra.mxu0 0.0
  %1122 = vmatprep.subr.mxu0 0.0
  %1123 = vmatpush2.msra.mxu0 0.0
  %1124 = vmatprep.subr.mxu0 0.0
  %1125 = vmatpush2.msra.mxu0 0.0
  %1126 = vmatprep.subr.mxu0 0.0
  %1127 = vmatpush2.msra.mxu0 0.0
  %1128 = vmatprep.subr.mxu0 0.0
  %1129 = vmatpush2.msra.mxu0 0.0
  %1130 = vmatprep.subr.mxu0 0.0
  %1131 = vmatpush2.msra.mxu0 0.0
  %1132 = vmatprep.subr.mxu0 0.0
  %1133 = vmatpush2.msra.mxu0 0.0
  %1134 = vmatprep.subr.mxu0 0.0
  %1135 = vmatpush2.msra.mxu0 0.0
  %1136 = vmatprep.subr.mxu0 0.0
  %1137 = vmatpush2.msra.mxu0 0.0
  %1138 = vmatprep.subr.mxu0 0.0
  %1139 = vmatpush2.msra.mxu0 0.0
  %1140 = vmatprep.subr.mxu0 0.0
  %1141 = vmatpush2.msra.mxu0 0.0
  %1142 = vmatprep.subr.mxu0 0.0
  %1143 = vmatpush2.msra.mxu0 0.0
  %1144 = vmatprep.mubr.f32.mxu0 0.0
  %v1145 = vand.u32 %v1053, 4294901760
  %v1146 = vsub.f32 %v1053, %v1145
  %v1147 = vand.u32 %v1146, 4294901760
  %v1148 = vsub.f32 %v1146, %v1147
  %v1149 = vand.u32 %v1148, 4294901760
  %1150 = vmatmul.mubr.f32.gmra.mxu0 %v1149
  %v1151 = vpop.f32.mrf.mxu0
  %v1152 = vadd.f32 %v1039, %v1151
  %v1153 = vpop.f32.mrf.mxu0
  %v1154 = vadd.f32 %v1040, %v1153
  %1155 = vmatprep.mubr.f32.mxu0 0.0
  %v1156 = vand.u32 %v1056, 4294901760
  %v1157 = vsub.f32 %v1056, %v1156
  %v1158 = vand.u32 %v1157, 4294901760
  %v1159 = vsub.f32 %v1157, %v1158
  %v1160 = vand.u32 %v1159, 4294901760
  %1161 = vmatmul.mubr.f32.gmra.mxu0 %v1160
  %v1162 = vpop.f32.mrf.mxu0
  %v1163 = vadd.f32 %v1043, %v1162
  %v1164 = vpop.f32.mrf.mxu0
  %v1165 = vadd.f32 %v1044, %v1164
  %1166 = vmatprep.mubr.f32.mxu0 0.0
  %v1167 = vand.u32 %v1059, 4294901760
  %v1168 = vsub.f32 %v1059, %v1167
  %v1169 = vand.u32 %v1168, 4294901760
  %v1170 = vsub.f32 %v1168, %v1169
  %v1171 = vand.u32 %v1170, 4294901760
  %1172 = vmatmul.mubr.f32.gmra.mxu0 %v1171
  %v1173 = vpop.f32.mrf.mxu0
  %v1174 = vadd.f32 %v1047, %v1173
  %v1175 = vpop.f32.mrf.mxu0
  %v1176 = vadd.f32 %v1048, %v1175
  %1177 = vdwg.mxu0
  %1178 = vmatprep.subr.mxu0 0.0
  %1179 = vmatpush1.msra.mxu0 0.0
  %1180 = vmatprep.subr.mxu0 0.0
  %1181 = vmatpush1.msra.mxu0 0.0
  %1182 = vmatprep.subr.mxu0 0.0
  %1183 = vmatpush1.msra.mxu0 0.0
  %1184 = vmatprep.subr.mxu0 0.0
  %1185 = vmatpush1.msra.mxu0 0.0
  %1186 = vmatprep.subr.mxu0 0.0
  %1187 = vmatpush1.msra.mxu0 0.0
  %1188 = vmatprep.subr.mxu0 0.0
  %1189 = vmatpush1.msra.mxu0 0.0
  %1190 = vmatprep.subr.mxu0 0.0
  %1191 = vmatpush1.msra.mxu0 0.0
  %1192 = vmatprep.subr.mxu0 0.0
  %1193 = vmatpush1.msra.mxu0 0.0
  %1194 = vmatprep.subr.mxu0 0.0
  %1195 = vmatpush1.msra.mxu0 0.0
  %1196 = vmatprep.subr.mxu0 0.0
  %1197 = vmatpush1.msra.mxu0 0.0
  %1198 = vmatprep.subr.mxu0 0.0
  %1199 = vmatpush1.msra.mxu0 0.0
  %1200 = vmatprep.subr.mxu0 0.0
  %1201 = vmatpush1.msra.mxu0 0.0
  %1202 = vmatprep.subr.mxu0 0.0
  %1203 = vmatpush1.msra.mxu0 0.0
  %v1204 = vand.u32 %v1066, 4294901760
  %v1205 = vsub.f32 %v1066, %v1204
  %v1206 = vand.u32 %v1205, 4294901760
  %v1207 = vsub.f32 %v1205, %v1206
  %v1208 = vand.u32 %v1207, 4294901760
  %1209 = vmatprep.subr.mxu0 %v1208
  %v1210 = vand.u32 %v1063, 4294901760
  %v1211 = vsub.f32 %v1063, %v1210
  %v1212 = vand.u32 %v1211, 4294901760
  %v1213 = vsub.f32 %v1211, %v1212
  %v1214 = vand.u32 %v1213, 4294901760
  %1215 = vmatpush1.msra.mxu0 %v1214
  %v1216 = vand.u32 %v1032, 4294901760
  %v1217 = vsub.f32 %v1032, %v1216
  %v1218 = vand.u32 %v1217, 4294901760
  %v1219 = vsub.f32 %v1217, %v1218
  %v1220 = vand.u32 %v1219, 4294901760
  %1221 = vmatprep.subr.mxu0 %v1220
  %v1222 = vand.u32 %v1031, 4294901760
  %v1223 = vsub.f32 %v1031, %v1222
  %v1224 = vand.u32 %v1223, 4294901760
  %v1225 = vsub.f32 %v1223, %v1224
  %v1226 = vand.u32 %v1225, 4294901760
  %1227 = vmatpush1.msra.mxu0 %v1226
  %v1228 = vand.u32 %v1028, 4294901760
  %v1229 = vsub.f32 %v1028, %v1228
  %v1230 = vand.u32 %v1229, 4294901760
  %v1231 = vsub.f32 %v1229, %v1230
  %v1232 = vand.u32 %v1231, 4294901760
  %1233 = vmatprep.subr.mxu0 %v1232
  %v1234 = vand.u32 %v1027, 4294901760
  %v1235 = vsub.f32 %v1027, %v1234
  %v1236 = vand.u32 %v1235, 4294901760
  %v1237 = vsub.f32 %v1235, %v1236
  %v1238 = vand.u32 %v1237, 4294901760
  %1239 = vmatpush1.msra.mxu0 %v1238
  %1240 = vmatprep.subr.mxu0 0.0
  %1241 = vmatpush2.msra.mxu0 0.0
  %1242 = vmatprep.subr.mxu0 0.0
  %1243 = vmatpush2.msra.mxu0 0.0
  %1244 = vmatprep.subr.mxu0 0.0
  %1245 = vmatpush2.msra.mxu0 0.0
  %1246 = vmatprep.subr.mxu0 0.0
  %1247 = vmatpush2.msra.mxu0 0.0
  %1248 = vmatprep.subr.mxu0 0.0
  %1249 = vmatpush2.msra.mxu0 0.0
  %1250 = vmatprep.subr.mxu0 0.0
  %1251 = vmatpush2.msra.mxu0 0.0
  %1252 = vmatprep.subr.mxu0 0.0
  %1253 = vmatpush2.msra.mxu0 0.0
  %1254 = vmatprep.subr.mxu0 0.0
  %1255 = vmatpush2.msra.mxu0 0.0
  %1256 = vmatprep.subr.mxu0 0.0
  %1257 = vmatpush2.msra.mxu0 0.0
  %1258 = vmatprep.subr.mxu0 0.0
  %1259 = vmatpush2.msra.mxu0 0.0
  %1260 = vmatprep.subr.mxu0 0.0
  %1261 = vmatpush2.msra.mxu0 0.0
  %1262 = vmatprep.subr.mxu0 0.0
  %1263 = vmatpush2.msra.mxu0 0.0
  %1264 = vmatprep.subr.mxu0 0.0
  %1265 = vmatpush2.msra.mxu0 0.0
  %1266 = vmatprep.subr.mxu0 0.0
  %1267 = vmatpush2.msra.mxu0 0.0
  %1268 = vmatprep.subr.mxu0 0.0
  %1269 = vmatpush2.msra.mxu0 0.0
  %1270 = vmatprep.subr.mxu0 0.0
  %1271 = vmatpush2.msra.mxu0 0.0
  %1272 = vmatprep.mubr.f32.mxu0 0.0
  %v1273 = vand.u32 %v1053, 4294901760
  %1274 = vmatmul.mubr.f32.gmra.mxu0 %v1273
  %v1275 = vpop.f32.mrf.mxu0
  %v1276 = vadd.f32 %v1152, %v1275
  %v1277 = vpop.f32.mrf.mxu0
  %v1278 = vadd.f32 %v1154, %v1277
  %1279 = vmatprep.mubr.f32.mxu0 0.0
  %v1280 = vand.u32 %v1056, 4294901760
  %1281 = vmatmul.mubr.f32.gmra.mxu0 %v1280
  %v1282 = vpop.f32.mrf.mxu0
  %v1283 = vadd.f32 %v1163, %v1282
  %v1284 = vpop.f32.mrf.mxu0
  %v1285 = vadd.f32 %v1165, %v1284
  %1286 = vmatprep.mubr.f32.mxu0 0.0
  %v1287 = vand.u32 %v1059, 4294901760
  %1288 = vmatmul.mubr.f32.gmra.mxu0 %v1287
  %v1289 = vpop.f32.mrf.mxu0
  %v1290 = vadd.f32 %v1174, %v1289
  %v1291 = vpop.f32.mrf.mxu0
  %v1292 = vadd.f32 %v1176, %v1291
  %1293 = vdwg.mxu0
  %1294 = vmatprep.subr.mxu0 0.0
  %1295 = vmatpush1.msra.mxu0 0.0
  %1296 = vmatprep.subr.mxu0 0.0
  %1297 = vmatpush1.msra.mxu0 0.0
  %1298 = vmatprep.subr.mxu0 0.0
  %1299 = vmatpush1.msra.mxu0 0.0
  %1300 = vmatprep.subr.mxu0 0.0
  %1301 = vmatpush1.msra.mxu0 0.0
  %1302 = vmatprep.subr.mxu0 0.0
  %1303 = vmatpush1.msra.mxu0 0.0
  %1304 = vmatprep.subr.mxu0 0.0
  %1305 = vmatpush1.msra.mxu0 0.0
  %1306 = vmatprep.subr.mxu0 0.0
  %1307 = vmatpush1.msra.mxu0 0.0
  %1308 = vmatprep.subr.mxu0 0.0
  %1309 = vmatpush1.msra.mxu0 0.0
  %1310 = vmatprep.subr.mxu0 0.0
  %1311 = vmatpush1.msra.mxu0 0.0
  %1312 = vmatprep.subr.mxu0 0.0
  %1313 = vmatpush1.msra.mxu0 0.0
  %1314 = vmatprep.subr.mxu0 0.0
  %1315 = vmatpush1.msra.mxu0 0.0
  %1316 = vmatprep.subr.mxu0 0.0
  %1317 = vmatpush1.msra.mxu0 0.0
  %1318 = vmatprep.subr.mxu0 0.0
  %1319 = vmatpush1.msra.mxu0 0.0
  %v1320 = vand.u32 %v1066, 4294901760
  %v1321 = vsub.f32 %v1066, %v1320
  %1322 = vmatprep.subr.mxu0 %v1321
  %v1323 = vand.u32 %v1063, 4294901760
  %v1324 = vsub.f32 %v1063, %v1323
  %1325 = vmatpush1.msra.mxu0 %v1324
  %v1326 = vand.u32 %v1032, 4294901760
  %v1327 = vsub.f32 %v1032, %v1326
  %1328 = vmatprep.subr.mxu0 %v1327
  %v1329 = vand.u32 %v1031, 4294901760
  %v1330 = vsub.f32 %v1031, %v1329
  %1331 = vmatpush1.msra.mxu0 %v1330
  %v1332 = vand.u32 %v1028, 4294901760
  %v1333 = vsub.f32 %v1028, %v1332
  %1334 = vmatprep.subr.mxu0 %v1333
  %v1335 = vand.u32 %v1027, 4294901760
  %v1336 = vsub.f32 %v1027, %v1335
  %1337 = vmatpush1.msra.mxu0 %v1336
  %1338 = vmatprep.subr.mxu0 0.0
  %1339 = vmatpush2.msra.mxu0 0.0
  %1340 = vmatprep.subr.mxu0 0.0
  %1341 = vmatpush2.msra.mxu0 0.0
  %1342 = vmatprep.subr.mxu0 0.0
  %1343 = vmatpush2.msra.mxu0 0.0
  %1344 = vmatprep.subr.mxu0 0.0
  %1345 = vmatpush2.msra.mxu0 0.0
  %1346 = vmatprep.subr.mxu0 0.0
  %1347 = vmatpush2.msra.mxu0 0.0
  %1348 = vmatprep.subr.mxu0 0.0
  %1349 = vmatpush2.msra.mxu0 0.0
  %1350 = vmatprep.subr.mxu0 0.0
  %1351 = vmatpush2.msra.mxu0 0.0
  %1352 = vmatprep.subr.mxu0 0.0
  %1353 = vmatpush2.msra.mxu0 0.0
  %1354 = vmatprep.subr.mxu0 0.0
  %1355 = vmatpush2.msra.mxu0 0.0
  %1356 = vmatprep.subr.mxu0 0.0
  %1357 = vmatpush2.msra.mxu0 0.0
  %1358 = vmatprep.subr.mxu0 0.0
  %1359 = vmatpush2.msra.mxu0 0.0
  %1360 = vmatprep.subr.mxu0 0.0
  %1361 = vmatpush2.msra.mxu0 0.0
  %1362 = vmatprep.subr.mxu0 0.0
  %1363 = vmatpush2.msra.mxu0 0.0
  %1364 = vmatprep.subr.mxu0 0.0
  %1365 = vmatpush2.msra.mxu0 0.0
  %1366 = vmatprep.subr.mxu0 0.0
  %1367 = vmatpush2.msra.mxu0 0.0
  %1368 = vmatprep.subr.mxu0 0.0
  %1369 = vmatpush2.msra.mxu0 0.0
  %1370 = vmatprep.mubr.f32.mxu0 0.0
  %v1371 = vand.u32 %v1053, 4294901760
  %v1372 = vsub.f32 %v1053, %v1371
  %1373 = vmatmul.mubr.f32.gmra.mxu0 %v1372
  %v1374 = vpop.f32.mrf.mxu0
  %v1375 = vadd.f32 %v1276, %v1374
  %v1376 = vpop.f32.mrf.mxu0
  %v1377 = vadd.f32 %v1278, %v1376
  %1378 = vmatprep.mubr.f32.mxu0 0.0
  %v1379 = vand.u32 %v1056, 4294901760
  %v1380 = vsub.f32 %v1056, %v1379
  %1381 = vmatmul.mubr.f32.gmra.mxu0 %v1380
  %v1382 = vpop.f32.mrf.mxu0
  %v1383 = vadd.f32 %v1283, %v1382
  %v1384 = vpop.f32.mrf.mxu0
  %v1385 = vadd.f32 %v1285, %v1384
  %1386 = vmatprep.mubr.f32.mxu0 0.0
  %v1387 = vand.u32 %v1059, 4294901760
  %v1388 = vsub.f32 %v1059, %v1387
  %1389 = vmatmul.mubr.f32.gmra.mxu0 %v1388
  %v1390 = vpop.f32.mrf.mxu0
  %v1391 = vadd.f32 %v1290, %v1390
  %v1392 = vpop.f32.mrf.mxu0
  %v1393 = vadd.f32 %v1292, %v1392
  %1394 = vdwg.mxu0
  %1395 = vmatprep.subr.mxu0 0.0
  %1396 = vmatpush1.msra.mxu0 0.0
  %1397 = vmatprep.subr.mxu0 0.0
  %1398 = vmatpush1.msra.mxu0 0.0
  %1399 = vmatprep.subr.mxu0 0.0
  %1400 = vmatpush1.msra.mxu0 0.0
  %1401 = vmatprep.subr.mxu0 0.0
  %1402 = vmatpush1.msra.mxu0 0.0
  %1403 = vmatprep.subr.mxu0 0.0
  %1404 = vmatpush1.msra.mxu0 0.0
  %1405 = vmatprep.subr.mxu0 0.0
  %1406 = vmatpush1.msra.mxu0 0.0
  %1407 = vmatprep.subr.mxu0 0.0
  %1408 = vmatpush1.msra.mxu0 0.0
  %1409 = vmatprep.subr.mxu0 0.0
  %1410 = vmatpush1.msra.mxu0 0.0
  %1411 = vmatprep.subr.mxu0 0.0
  %1412 = vmatpush1.msra.mxu0 0.0
  %1413 = vmatprep.subr.mxu0 0.0
  %1414 = vmatpush1.msra.mxu0 0.0
  %1415 = vmatprep.subr.mxu0 0.0
  %1416 = vmatpush1.msra.mxu0 0.0
  %1417 = vmatprep.subr.mxu0 0.0
  %1418 = vmatpush1.msra.mxu0 0.0
  %1419 = vmatprep.subr.mxu0 0.0
  %1420 = vmatpush1.msra.mxu0 0.0
  %v1421 = vand.u32 %v1066, 4294901760
  %1422 = vmatprep.subr.mxu0 %v1421
  %v1423 = vand.u32 %v1063, 4294901760
  %1424 = vmatpush1.msra.mxu0 %v1423
  %v1425 = vand.u32 %v1032, 4294901760
  %1426 = vmatprep.subr.mxu0 %v1425
  %v1427 = vand.u32 %v1031, 4294901760
  %1428 = vmatpush1.msra.mxu0 %v1427
  %v1429 = vand.u32 %v1028, 4294901760
  %1430 = vmatprep.subr.mxu0 %v1429
  %v1431 = vand.u32 %v1027, 4294901760
  %1432 = vmatpush1.msra.mxu0 %v1431
  %1433 = vmatprep.subr.mxu0 0.0
  %1434 = vmatpush2.msra.mxu0 0.0
  %1435 = vmatprep.subr.mxu0 0.0
  %1436 = vmatpush2.msra.mxu0 0.0
  %1437 = vmatprep.subr.mxu0 0.0
  %1438 = vmatpush2.msra.mxu0 0.0
  %1439 = vmatprep.subr.mxu0 0.0
  %1440 = vmatpush2.msra.mxu0 0.0
  %1441 = vmatprep.subr.mxu0 0.0
  %1442 = vmatpush2.msra.mxu0 0.0
  %1443 = vmatprep.subr.mxu0 0.0
  %1444 = vmatpush2.msra.mxu0 0.0
  %1445 = vmatprep.subr.mxu0 0.0
  %1446 = vmatpush2.msra.mxu0 0.0
  %1447 = vmatprep.subr.mxu0 0.0
  %1448 = vmatpush2.msra.mxu0 0.0
  %1449 = vmatprep.subr.mxu0 0.0
  %1450 = vmatpush2.msra.mxu0 0.0
  %1451 = vmatprep.subr.mxu0 0.0
  %1452 = vmatpush2.msra.mxu0 0.0
  %1453 = vmatprep.subr.mxu0 0.0
  %1454 = vmatpush2.msra.mxu0 0.0
  %1455 = vmatprep.subr.mxu0 0.0
  %1456 = vmatpush2.msra.mxu0 0.0
  %1457 = vmatprep.subr.mxu0 0.0
  %1458 = vmatpush2.msra.mxu0 0.0
  %1459 = vmatprep.subr.mxu0 0.0
  %1460 = vmatpush2.msra.mxu0 0.0
  %1461 = vmatprep.subr.mxu0 0.0
  %1462 = vmatpush2.msra.mxu0 0.0
  %1463 = vmatprep.subr.mxu0 0.0
  %1464 = vmatpush2.msra.mxu0 0.0
  %1465 = vmatprep.mubr.f32.mxu0 0.0
  %v1466 = vand.u32 %v1053, 4294901760
  %v1467 = vsub.f32 %v1053, %v1466
  %v1468 = vand.u32 %v1467, 4294901760
  %1469 = vmatmul.mubr.f32.gmra.mxu0 %v1468
  %v1470 = vpop.f32.mrf.mxu0
  %v1471 = vadd.f32 %v1375, %v1470
  %v1472 = vpop.f32.mrf.mxu0
  %v1473 = vadd.f32 %v1377, %v1472
  %1474 = vmatprep.mubr.f32.mxu0 0.0
  %v1475 = vand.u32 %v1056, 4294901760
  %v1476 = vsub.f32 %v1056, %v1475
  %v1477 = vand.u32 %v1476, 4294901760
  %1478 = vmatmul.mubr.f32.gmra.mxu0 %v1477
  %v1479 = vpop.f32.mrf.mxu0
  %v1480 = vadd.f32 %v1383, %v1479
  %v1481 = vpop.f32.mrf.mxu0
  %v1482 = vadd.f32 %v1385, %v1481
  %1483 = vmatprep.mubr.f32.mxu0 0.0
  %v1484 = vand.u32 %v1059, 4294901760
  %v1485 = vsub.f32 %v1059, %v1484
  %v1486 = vand.u32 %v1485, 4294901760
  %1487 = vmatmul.mubr.f32.gmra.mxu0 %v1486
  %v1488 = vpop.f32.mrf.mxu0
  %v1489 = vadd.f32 %v1391, %v1488
  %v1490 = vpop.f32.mrf.mxu0
  %v1491 = vadd.f32 %v1393, %v1490
  %1492 = vdwg.mxu0
  %1493 = vmatprep.subr.mxu0 0.0
  %1494 = vmatpush1.msra.mxu0 0.0
  %1495 = vmatprep.subr.mxu0 0.0
  %1496 = vmatpush1.msra.mxu0 0.0
  %1497 = vmatprep.subr.mxu0 0.0
  %1498 = vmatpush1.msra.mxu0 0.0
  %1499 = vmatprep.subr.mxu0 0.0
  %1500 = vmatpush1.msra.mxu0 0.0
  %1501 = vmatprep.subr.mxu0 0.0
  %1502 = vmatpush1.msra.mxu0 0.0
  %1503 = vmatprep.subr.mxu0 0.0
  %1504 = vmatpush1.msra.mxu0 0.0
  %1505 = vmatprep.subr.mxu0 0.0
  %1506 = vmatpush1.msra.mxu0 0.0
  %1507 = vmatprep.subr.mxu0 0.0
  %1508 = vmatpush1.msra.mxu0 0.0
  %1509 = vmatprep.subr.mxu0 0.0
  %1510 = vmatpush1.msra.mxu0 0.0
  %1511 = vmatprep.subr.mxu0 0.0
  %1512 = vmatpush1.msra.mxu0 0.0
  %1513 = vmatprep.subr.mxu0 0.0
  %1514 = vmatpush1.msra.mxu0 0.0
  %1515 = vmatprep.subr.mxu0 0.0
  %1516 = vmatpush1.msra.mxu0 0.0
  %1517 = vmatprep.subr.mxu0 0.0
  %1518 = vmatpush1.msra.mxu0 0.0
  %v1519 = vand.u32 %v1066, 4294901760
  %v1520 = vsub.f32 %v1066, %v1519
  %v1521 = vand.u32 %v1520, 4294901760
  %1522 = vmatprep.subr.mxu0 %v1521
  %v1523 = vand.u32 %v1063, 4294901760
  %v1524 = vsub.f32 %v1063, %v1523
  %v1525 = vand.u32 %v1524, 4294901760
  %1526 = vmatpush1.msra.mxu0 %v1525
  %v1527 = vand.u32 %v1032, 4294901760
  %v1528 = vsub.f32 %v1032, %v1527
  %v1529 = vand.u32 %v1528, 4294901760
  %1530 = vmatprep.subr.mxu0 %v1529
  %v1531 = vand.u32 %v1031, 4294901760
  %v1532 = vsub.f32 %v1031, %v1531
  %v1533 = vand.u32 %v1532, 4294901760
  %1534 = vmatpush1.msra.mxu0 %v1533
  %v1535 = vand.u32 %v1028, 4294901760
  %v1536 = vsub.f32 %v1028, %v1535
  %v1537 = vand.u32 %v1536, 4294901760
  %1538 = vmatprep.subr.mxu0 %v1537
  %v1539 = vand.u32 %v1027, 4294901760
  %v1540 = vsub.f32 %v1027, %v1539
  %v1541 = vand.u32 %v1540, 4294901760
  %1542 = vmatpush1.msra.mxu0 %v1541
  %1543 = vmatprep.subr.mxu0 0.0
  %1544 = vmatpush2.msra.mxu0 0.0
  %1545 = vmatprep.subr.mxu0 0.0
  %1546 = vmatpush2.msra.mxu0 0.0
  %1547 = vmatprep.subr.mxu0 0.0
  %1548 = vmatpush2.msra.mxu0 0.0
  %1549 = vmatprep.subr.mxu0 0.0
  %1550 = vmatpush2.msra.mxu0 0.0
  %1551 = vmatprep.subr.mxu0 0.0
  %1552 = vmatpush2.msra.mxu0 0.0
  %1553 = vmatprep.subr.mxu0 0.0
  %1554 = vmatpush2.msra.mxu0 0.0
  %1555 = vmatprep.subr.mxu0 0.0
  %1556 = vmatpush2.msra.mxu0 0.0
  %1557 = vmatprep.subr.mxu0 0.0
  %1558 = vmatpush2.msra.mxu0 0.0
  %1559 = vmatprep.subr.mxu0 0.0
  %1560 = vmatpush2.msra.mxu0 0.0
  %1561 = vmatprep.subr.mxu0 0.0
  %1562 = vmatpush2.msra.mxu0 0.0
  %1563 = vmatprep.subr.mxu0 0.0
  %1564 = vmatpush2.msra.mxu0 0.0
  %1565 = vmatprep.subr.mxu0 0.0
  %1566 = vmatpush2.msra.mxu0 0.0
  %1567 = vmatprep.subr.mxu0 0.0
  %1568 = vmatpush2.msra.mxu0 0.0
  %1569 = vmatprep.subr.mxu0 0.0
  %1570 = vmatpush2.msra.mxu0 0.0
  %1571 = vmatprep.subr.mxu0 0.0
  %1572 = vmatpush2.msra.mxu0 0.0
  %1573 = vmatprep.subr.mxu0 0.0
  %1574 = vmatpush2.msra.mxu0 0.0
  %1575 = vmatprep.mubr.f32.mxu0 0.0
  %v1576 = vand.u32 %v1053, 4294901760
  %1577 = vmatmul.mubr.f32.gmra.mxu0 %v1576
  %v1578 = vpop.f32.mrf.mxu0
  %v1579 = vadd.f32 %v1471, %v1578
  %v1580 = vpop.f32.mrf.mxu0
  %v1581 = vadd.f32 %v1473, %v1580
  %1582 = vmatprep.mubr.f32.mxu0 0.0
  %v1583 = vand.u32 %v1056, 4294901760
  %1584 = vmatmul.mubr.f32.gmra.mxu0 %v1583
  %v1585 = vpop.f32.mrf.mxu0
  %v1586 = vadd.f32 %v1480, %v1585
  %v1587 = vpop.f32.mrf.mxu0
  %v1588 = vadd.f32 %v1482, %v1587
  %1589 = vmatprep.mubr.f32.mxu0 0.0
  %v1590 = vand.u32 %v1059, 4294901760
  %1591 = vmatmul.mubr.f32.gmra.mxu0 %v1590
  %v1592 = vpop.f32.mrf.mxu0
  %v1593 = vadd.f32 %v1489, %v1592
  %v1594 = vpop.f32.mrf.mxu0
  %v1595 = vadd.f32 %v1491, %v1594
  %1596 = vdwg.mxu0
  %1597 = vmatprep.subr.mxu0 0.0
  %1598 = vmatpush1.msra.mxu0 0.0
  %1599 = vmatprep.subr.mxu0 0.0
  %1600 = vmatpush1.msra.mxu0 0.0
  %1601 = vmatprep.subr.mxu0 0.0
  %1602 = vmatpush1.msra.mxu0 0.0
  %1603 = vmatprep.subr.mxu0 0.0
  %1604 = vmatpush1.msra.mxu0 0.0
  %1605 = vmatprep.subr.mxu0 0.0
  %1606 = vmatpush1.msra.mxu0 0.0
  %1607 = vmatprep.subr.mxu0 0.0
  %1608 = vmatpush1.msra.mxu0 0.0
  %1609 = vmatprep.subr.mxu0 0.0
  %1610 = vmatpush1.msra.mxu0 0.0
  %1611 = vmatprep.subr.mxu0 0.0
  %1612 = vmatpush1.msra.mxu0 0.0
  %1613 = vmatprep.subr.mxu0 0.0
  %1614 = vmatpush1.msra.mxu0 0.0
  %1615 = vmatprep.subr.mxu0 0.0
  %1616 = vmatpush1.msra.mxu0 0.0
  %1617 = vmatprep.subr.mxu0 0.0
  %1618 = vmatpush1.msra.mxu0 0.0
  %1619 = vmatprep.subr.mxu0 0.0
  %1620 = vmatpush1.msra.mxu0 0.0
  %1621 = vmatprep.subr.mxu0 0.0
  %1622 = vmatpush1.msra.mxu0 0.0
  %v1623 = vand.u32 %v1066, 4294901760
  %1624 = vmatprep.subr.mxu0 %v1623
  %v1625 = vand.u32 %v1063, 4294901760
  %1626 = vmatpush1.msra.mxu0 %v1625
  %v1627 = vand.u32 %v1032, 4294901760
  %1628 = vmatprep.subr.mxu0 %v1627
  %v1629 = vand.u32 %v1031, 4294901760
  %1630 = vmatpush1.msra.mxu0 %v1629
  %v1631 = vand.u32 %v1028, 4294901760
  %1632 = vmatprep.subr.mxu0 %v1631
  %v1633 = vand.u32 %v1027, 4294901760
  %1634 = vmatpush1.msra.mxu0 %v1633
  %1635 = vmatprep.subr.mxu0 0.0
  %1636 = vmatpush2.msra.mxu0 0.0
  %1637 = vmatprep.subr.mxu0 0.0
  %1638 = vmatpush2.msra.mxu0 0.0
  %1639 = vmatprep.subr.mxu0 0.0
  %1640 = vmatpush2.msra.mxu0 0.0
  %1641 = vmatprep.subr.mxu0 0.0
  %1642 = vmatpush2.msra.mxu0 0.0
  %1643 = vmatprep.subr.mxu0 0.0
  %1644 = vmatpush2.msra.mxu0 0.0
  %1645 = vmatprep.subr.mxu0 0.0
  %1646 = vmatpush2.msra.mxu0 0.0
  %1647 = vmatprep.subr.mxu0 0.0
  %1648 = vmatpush2.msra.mxu0 0.0
  %1649 = vmatprep.subr.mxu0 0.0
  %1650 = vmatpush2.msra.mxu0 0.0
  %1651 = vmatprep.subr.mxu0 0.0
  %1652 = vmatpush2.msra.mxu0 0.0
  %1653 = vmatprep.subr.mxu0 0.0
  %1654 = vmatpush2.msra.mxu0 0.0
  %1655 = vmatprep.subr.mxu0 0.0
  %1656 = vmatpush2.msra.mxu0 0.0
  %1657 = vmatprep.subr.mxu0 0.0
  %1658 = vmatpush2.msra.mxu0 0.0
  %1659 = vmatprep.subr.mxu0 0.0
  %1660 = vmatpush2.msra.mxu0 0.0
  %1661 = vmatprep.subr.mxu0 0.0
  %1662 = vmatpush2.msra.mxu0 0.0
  %1663 = vmatprep.subr.mxu0 0.0
  %1664 = vmatpush2.msra.mxu0 0.0
  %1665 = vmatprep.subr.mxu0 0.0
  %1666 = vmatpush2.msra.mxu0 0.0
  %1667 = vmatprep.mubr.f32.mxu0 0.0
  %v1668 = vand.u32 %v1053, 4294901760
  %1669 = vmatmul.mubr.f32.gmra.mxu0 %v1668
  %v1670 = vpop.f32.mrf.mxu0
  %v1671 = vadd.f32 %v1579, %v1670
  %v1672 = vpop.f32.mrf.mxu0
  %v1673 = vadd.f32 %v1581, %v1672
  %1674 = vmatprep.mubr.f32.mxu0 0.0
  %v1675 = vand.u32 %v1056, 4294901760
  %1676 = vmatmul.mubr.f32.gmra.mxu0 %v1675
  %v1677 = vpop.f32.mrf.mxu0
  %v1678 = vadd.f32 %v1586, %v1677
  %v1679 = vpop.f32.mrf.mxu0
  %v1680 = vadd.f32 %v1588, %v1679
  %1681 = vmatprep.mubr.f32.mxu0 0.0
  %v1682 = vand.u32 %v1059, 4294901760
  %1683 = vmatmul.mubr.f32.gmra.mxu0 %v1682
  %v1684 = vpop.f32.mrf.mxu0
  %v1685 = vadd.f32 %v1593, %v1684
  %v1686 = vpop.f32.mrf.mxu0
  %v1687 = vadd.f32 %v1595, %v1686
  %1688 = vdwg.mxu0
  %1689 = vmatprep.subr.mxu0 0.0
  %1690 = vmatpush1.msra.mxu0 0.0
  %1691 = vmatprep.subr.mxu0 0.0
  %1692 = vmatpush1.msra.mxu0 0.0
  %1693 = vmatprep.subr.mxu0 0.0
  %1694 = vmatpush1.msra.mxu0 0.0
  %1695 = vmatprep.subr.mxu0 0.0
  %1696 = vmatpush1.msra.mxu0 0.0
  %1697 = vmatprep.subr.mxu0 0.0
  %1698 = vmatpush1.msra.mxu0 0.0
  %1699 = vmatprep.subr.mxu0 0.0
  %1700 = vmatpush1.msra.mxu0 0.0
  %1701 = vmatprep.subr.mxu0 0.0
  %1702 = vmatpush1.msra.mxu0 0.0
  %1703 = vmatprep.subr.mxu0 0.0
  %1704 = vmatpush1.msra.mxu0 0.0
  %1705 = vmatprep.subr.mxu0 0.0
  %1706 = vmatpush1.msra.mxu0 0.0
  %1707 = vmatprep.subr.mxu0 0.0
  %1708 = vmatpush1.msra.mxu0 0.0
  %1709 = vmatprep.subr.mxu0 0.0
  %1710 = vmatpush1.msra.mxu0 0.0
  %1711 = vmatprep.subr.mxu0 0.0
  %1712 = vmatpush1.msra.mxu0 0.0
  %1713 = vmatprep.subr.mxu0 0.0
  %1714 = vmatpush1.msra.mxu0 0.0
  %v1715 = vand.u32 %v1072, 4294901760
  %1716 = vmatprep.subr.mxu0 %v1715
  %v1717 = vand.u32 %v1069, 4294901760
  %1718 = vmatpush1.msra.mxu0 %v1717
  %v1719 = vand.u32 %v1034, 4294901760
  %1720 = vmatprep.subr.mxu0 %v1719
  %v1721 = vand.u32 %v1033, 4294901760
  %1722 = vmatpush1.msra.mxu0 %v1721
  %v1723 = vand.u32 %v1030, 4294901760
  %1724 = vmatprep.subr.mxu0 %v1723
  %v1725 = vand.u32 %v1029, 4294901760
  %1726 = vmatpush1.msra.mxu0 %v1725
  %1727 = vmatprep.subr.mxu0 0.0
  %1728 = vmatpush2.msra.mxu0 0.0
  %1729 = vmatprep.subr.mxu0 0.0
  %1730 = vmatpush2.msra.mxu0 0.0
  %1731 = vmatprep.subr.mxu0 0.0
  %1732 = vmatpush2.msra.mxu0 0.0
  %1733 = vmatprep.subr.mxu0 0.0
  %1734 = vmatpush2.msra.mxu0 0.0
  %1735 = vmatprep.subr.mxu0 0.0
  %1736 = vmatpush2.msra.mxu0 0.0
  %1737 = vmatprep.subr.mxu0 0.0
  %1738 = vmatpush2.msra.mxu0 0.0
  %1739 = vmatprep.subr.mxu0 0.0
  %1740 = vmatpush2.msra.mxu0 0.0
  %1741 = vmatprep.subr.mxu0 0.0
  %1742 = vmatpush2.msra.mxu0 0.0
  %1743 = vmatprep.subr.mxu0 0.0
  %1744 = vmatpush2.msra.mxu0 0.0
  %1745 = vmatprep.subr.mxu0 0.0
  %1746 = vmatpush2.msra.mxu0 0.0
  %1747 = vmatprep.subr.mxu0 0.0
  %1748 = vmatpush2.msra.mxu0 0.0
  %1749 = vmatprep.subr.mxu0 0.0
  %1750 = vmatpush2.msra.mxu0 0.0
  %1751 = vmatprep.subr.mxu0 0.0
  %1752 = vmatpush2.msra.mxu0 0.0
  %1753 = vmatprep.subr.mxu0 0.0
  %1754 = vmatpush2.msra.mxu0 0.0
  %1755 = vmatprep.subr.mxu0 0.0
  %1756 = vmatpush2.msra.mxu0 0.0
  %1757 = vmatprep.subr.mxu0 0.0
  %1758 = vmatpush2.msra.mxu0 0.0
  %1759 = vmatprep.mubr.f32.mxu0 0.0
  %v1760 = vand.u32 %v1053, 4294901760
  %v1761 = vsub.f32 %v1053, %v1760
  %v1762 = vand.u32 %v1761, 4294901760
  %v1763 = vsub.f32 %v1761, %v1762
  %v1764 = vand.u32 %v1763, 4294901760
  %1765 = vmatmul.mubr.f32.gmra.mxu0 %v1764
  %v1766 = vpop.f32.mrf.mxu0
  %v1767 = vadd.f32 %v1041, %v1766
  %v1768 = vpop.f32.mrf.mxu0
  %v1769 = vadd.f32 %v1042, %v1768
  %1770 = vmatprep.mubr.f32.mxu0 0.0
  %v1771 = vand.u32 %v1056, 4294901760
  %v1772 = vsub.f32 %v1056, %v1771
  %v1773 = vand.u32 %v1772, 4294901760
  %v1774 = vsub.f32 %v1772, %v1773
  %v1775 = vand.u32 %v1774, 4294901760
  %1776 = vmatmul.mubr.f32.gmra.mxu0 %v1775
  %v1777 = vpop.f32.mrf.mxu0
  %v1778 = vadd.f32 %v1045, %v1777
  %v1779 = vpop.f32.mrf.mxu0
  %v1780 = vadd.f32 %v1046, %v1779
  %1781 = vmatprep.mubr.f32.mxu0 0.0
  %v1782 = vand.u32 %v1059, 4294901760
  %v1783 = vsub.f32 %v1059, %v1782
  %v1784 = vand.u32 %v1783, 4294901760
  %v1785 = vsub.f32 %v1783, %v1784
  %v1786 = vand.u32 %v1785, 4294901760
  %1787 = vmatmul.mubr.f32.gmra.mxu0 %v1786
  %v1788 = vpop.f32.mrf.mxu0
  %v1789 = vadd.f32 %v1049, %v1788
  %v1790 = vpop.f32.mrf.mxu0
  %v1791 = vadd.f32 %v1050, %v1790
  %1792 = vdwg.mxu0
  %1793 = vmatprep.subr.mxu0 0.0
  %1794 = vmatpush1.msra.mxu0 0.0
  %1795 = vmatprep.subr.mxu0 0.0
  %1796 = vmatpush1.msra.mxu0 0.0
  %1797 = vmatprep.subr.mxu0 0.0
  %1798 = vmatpush1.msra.mxu0 0.0
  %1799 = vmatprep.subr.mxu0 0.0
  %1800 = vmatpush1.msra.mxu0 0.0
  %1801 = vmatprep.subr.mxu0 0.0
  %1802 = vmatpush1.msra.mxu0 0.0
  %1803 = vmatprep.subr.mxu0 0.0
  %1804 = vmatpush1.msra.mxu0 0.0
  %1805 = vmatprep.subr.mxu0 0.0
  %1806 = vmatpush1.msra.mxu0 0.0
  %1807 = vmatprep.subr.mxu0 0.0
  %1808 = vmatpush1.msra.mxu0 0.0
  %1809 = vmatprep.subr.mxu0 0.0
  %1810 = vmatpush1.msra.mxu0 0.0
  %1811 = vmatprep.subr.mxu0 0.0
  %1812 = vmatpush1.msra.mxu0 0.0
  %1813 = vmatprep.subr.mxu0 0.0
  %1814 = vmatpush1.msra.mxu0 0.0
  %1815 = vmatprep.subr.mxu0 0.0
  %1816 = vmatpush1.msra.mxu0 0.0
  %1817 = vmatprep.subr.mxu0 0.0
  %1818 = vmatpush1.msra.mxu0 0.0
  %v1819 = vand.u32 %v1072, 4294901760
  %v1820 = vsub.f32 %v1072, %v1819
  %v1821 = vand.u32 %v1820, 4294901760
  %v1822 = vsub.f32 %v1820, %v1821
  %v1823 = vand.u32 %v1822, 4294901760
  %1824 = vmatprep.subr.mxu0 %v1823
  %v1825 = vand.u32 %v1069, 4294901760
  %v1826 = vsub.f32 %v1069, %v1825
  %v1827 = vand.u32 %v1826, 4294901760
  %v1828 = vsub.f32 %v1826, %v1827
  %v1829 = vand.u32 %v1828, 4294901760
  %1830 = vmatpush1.msra.mxu0 %v1829
  %v1831 = vand.u32 %v1034, 4294901760
  %v1832 = vsub.f32 %v1034, %v1831
  %v1833 = vand.u32 %v1832, 4294901760
  %v1834 = vsub.f32 %v1832, %v1833
  %v1835 = vand.u32 %v1834, 4294901760
  %1836 = vmatprep.subr.mxu0 %v1835
  %v1837 = vand.u32 %v1033, 4294901760
  %v1838 = vsub.f32 %v1033, %v1837
  %v1839 = vand.u32 %v1838, 4294901760
  %v1840 = vsub.f32 %v1838, %v1839
  %v1841 = vand.u32 %v1840, 4294901760
  %1842 = vmatpush1.msra.mxu0 %v1841
  %v1843 = vand.u32 %v1030, 4294901760
  %v1844 = vsub.f32 %v1030, %v1843
  %v1845 = vand.u32 %v1844, 4294901760
  %v1846 = vsub.f32 %v1844, %v1845
  %v1847 = vand.u32 %v1846, 4294901760
  %1848 = vmatprep.subr.mxu0 %v1847
  %v1849 = vand.u32 %v1029, 4294901760
  %v1850 = vsub.f32 %v1029, %v1849
  %v1851 = vand.u32 %v1850, 4294901760
  %v1852 = vsub.f32 %v1850, %v1851
  %v1853 = vand.u32 %v1852, 4294901760
  %1854 = vmatpush1.msra.mxu0 %v1853
  %1855 = vmatprep.subr.mxu0 0.0
  %1856 = vmatpush2.msra.mxu0 0.0
  %1857 = vmatprep.subr.mxu0 0.0
  %1858 = vmatpush2.msra.mxu0 0.0
  %1859 = vmatprep.subr.mxu0 0.0
  %1860 = vmatpush2.msra.mxu0 0.0
  %1861 = vmatprep.subr.mxu0 0.0
  %1862 = vmatpush2.msra.mxu0 0.0
  %1863 = vmatprep.subr.mxu0 0.0
  %1864 = vmatpush2.msra.mxu0 0.0
  %1865 = vmatprep.subr.mxu0 0.0
  %1866 = vmatpush2.msra.mxu0 0.0
  %1867 = vmatprep.subr.mxu0 0.0
  %1868 = vmatpush2.msra.mxu0 0.0
  %1869 = vmatprep.subr.mxu0 0.0
  %1870 = vmatpush2.msra.mxu0 0.0
  %1871 = vmatprep.subr.mxu0 0.0
  %1872 = vmatpush2.msra.mxu0 0.0
  %1873 = vmatprep.subr.mxu0 0.0
  %1874 = vmatpush2.msra.mxu0 0.0
  %1875 = vmatprep.subr.mxu0 0.0
  %1876 = vmatpush2.msra.mxu0 0.0
  %1877 = vmatprep.subr.mxu0 0.0
  %1878 = vmatpush2.msra.mxu0 0.0
  %1879 = vmatprep.subr.mxu0 0.0
  %1880 = vmatpush2.msra.mxu0 0.0
  %1881 = vmatprep.subr.mxu0 0.0
  %1882 = vmatpush2.msra.mxu0 0.0
  %1883 = vmatprep.subr.mxu0 0.0
  %1884 = vmatpush2.msra.mxu0 0.0
  %1885 = vmatprep.subr.mxu0 0.0
  %1886 = vmatpush2.msra.mxu0 0.0
  %1887 = vmatprep.mubr.f32.mxu0 0.0
  %v1888 = vand.u32 %v1053, 4294901760
  %1889 = vmatmul.mubr.f32.gmra.mxu0 %v1888
  %v1890 = vpop.f32.mrf.mxu0
  %v1891 = vadd.f32 %v1767, %v1890
  %v1892 = vpop.f32.mrf.mxu0
  %v1893 = vadd.f32 %v1769, %v1892
  %1894 = vmatprep.mubr.f32.mxu0 0.0
  %v1895 = vand.u32 %v1056, 4294901760
  %1896 = vmatmul.mubr.f32.gmra.mxu0 %v1895
  %v1897 = vpop.f32.mrf.mxu0
  %v1898 = vadd.f32 %v1778, %v1897
  %v1899 = vpop.f32.mrf.mxu0
  %v1900 = vadd.f32 %v1780, %v1899
  %1901 = vmatprep.mubr.f32.mxu0 0.0
  %v1902 = vand.u32 %v1059, 4294901760
  %1903 = vmatmul.mubr.f32.gmra.mxu0 %v1902
  %v1904 = vpop.f32.mrf.mxu0
  %v1905 = vadd.f32 %v1789, %v1904
  %v1906 = vpop.f32.mrf.mxu0
  %v1907 = vadd.f32 %v1791, %v1906
  %1908 = vdwg.mxu0
  %1909 = vmatprep.subr.mxu0 0.0
  %1910 = vmatpush1.msra.mxu0 0.0
  %1911 = vmatprep.subr.mxu0 0.0
  %1912 = vmatpush1.msra.mxu0 0.0
  %1913 = vmatprep.subr.mxu0 0.0
  %1914 = vmatpush1.msra.mxu0 0.0
  %1915 = vmatprep.subr.mxu0 0.0
  %1916 = vmatpush1.msra.mxu0 0.0
  %1917 = vmatprep.subr.mxu0 0.0
  %1918 = vmatpush1.msra.mxu0 0.0
  %1919 = vmatprep.subr.mxu0 0.0
  %1920 = vmatpush1.msra.mxu0 0.0
  %1921 = vmatprep.subr.mxu0 0.0
  %1922 = vmatpush1.msra.mxu0 0.0
  %1923 = vmatprep.subr.mxu0 0.0
  %1924 = vmatpush1.msra.mxu0 0.0
  %1925 = vmatprep.subr.mxu0 0.0
  %1926 = vmatpush1.msra.mxu0 0.0
  %1927 = vmatprep.subr.mxu0 0.0
  %1928 = vmatpush1.msra.mxu0 0.0
  %1929 = vmatprep.subr.mxu0 0.0
  %1930 = vmatpush1.msra.mxu0 0.0
  %1931 = vmatprep.subr.mxu0 0.0
  %1932 = vmatpush1.msra.mxu0 0.0
  %1933 = vmatprep.subr.mxu0 0.0
  %1934 = vmatpush1.msra.mxu0 0.0
  %v1935 = vand.u32 %v1072, 4294901760
  %v1936 = vsub.f32 %v1072, %v1935
  %1937 = vmatprep.subr.mxu0 %v1936
  %v1938 = vand.u32 %v1069, 4294901760
  %v1939 = vsub.f32 %v1069, %v1938
  %1940 = vmatpush1.msra.mxu0 %v1939
  %v1941 = vand.u32 %v1034, 4294901760
  %v1942 = vsub.f32 %v1034, %v1941
  %1943 = vmatprep.subr.mxu0 %v1942
  %v1944 = vand.u32 %v1033, 4294901760
  %v1945 = vsub.f32 %v1033, %v1944
  %1946 = vmatpush1.msra.mxu0 %v1945
  %v1947 = vand.u32 %v1030, 4294901760
  %v1948 = vsub.f32 %v1030, %v1947
  %1949 = vmatprep.subr.mxu0 %v1948
  %v1950 = vand.u32 %v1029, 4294901760
  %v1951 = vsub.f32 %v1029, %v1950
  %1952 = vmatpush1.msra.mxu0 %v1951
  %1953 = vmatprep.subr.mxu0 0.0
  %1954 = vmatpush2.msra.mxu0 0.0
  %1955 = vmatprep.subr.mxu0 0.0
  %1956 = vmatpush2.msra.mxu0 0.0
  %1957 = vmatprep.subr.mxu0 0.0
  %1958 = vmatpush2.msra.mxu0 0.0
  %1959 = vmatprep.subr.mxu0 0.0
  %1960 = vmatpush2.msra.mxu0 0.0
  %1961 = vmatprep.subr.mxu0 0.0
  %1962 = vmatpush2.msra.mxu0 0.0
  %1963 = vmatprep.subr.mxu0 0.0
  %1964 = vmatpush2.msra.mxu0 0.0
  %1965 = vmatprep.subr.mxu0 0.0
  %1966 = vmatpush2.msra.mxu0 0.0
  %1967 = vmatprep.subr.mxu0 0.0
  %1968 = vmatpush2.msra.mxu0 0.0
  %1969 = vmatprep.subr.mxu0 0.0
  %1970 = vmatpush2.msra.mxu0 0.0
  %1971 = vmatprep.subr.mxu0 0.0
  %1972 = vmatpush2.msra.mxu0 0.0
  %1973 = vmatprep.subr.mxu0 0.0
  %1974 = vmatpush2.msra.mxu0 0.0
  %1975 = vmatprep.subr.mxu0 0.0
  %1976 = vmatpush2.msra.mxu0 0.0
  %1977 = vmatprep.subr.mxu0 0.0
  %1978 = vmatpush2.msra.mxu0 0.0
  %1979 = vmatprep.subr.mxu0 0.0
  %1980 = vmatpush2.msra.mxu0 0.0
  %1981 = vmatprep.subr.mxu0 0.0
  %1982 = vmatpush2.msra.mxu0 0.0
  %1983 = vmatprep.subr.mxu0 0.0
  %1984 = vmatpush2.msra.mxu0 0.0
  %1985 = vmatprep.mubr.f32.mxu0 0.0
  %v1986 = vand.u32 %v1053, 4294901760
  %v1987 = vsub.f32 %v1053, %v1986
  %1988 = vmatmul.mubr.f32.gmra.mxu0 %v1987
  %v1989 = vpop.f32.mrf.mxu0
  %v1990 = vadd.f32 %v1891, %v1989
  %v1991 = vpop.f32.mrf.mxu0
  %v1992 = vadd.f32 %v1893, %v1991
  %1993 = vmatprep.mubr.f32.mxu0 0.0
  %v1994 = vand.u32 %v1056, 4294901760
  %v1995 = vsub.f32 %v1056, %v1994
  %1996 = vmatmul.mubr.f32.gmra.mxu0 %v1995
  %v1997 = vpop.f32.mrf.mxu0
  %v1998 = vadd.f32 %v1898, %v1997
  %v1999 = vpop.f32.mrf.mxu0
  %v2000 = vadd.f32 %v1900, %v1999
  %2001 = vmatprep.mubr.f32.mxu0 0.0
  %v2002 = vand.u32 %v1059, 4294901760
  %v2003 = vsub.f32 %v1059, %v2002
  %2004 = vmatmul.mubr.f32.gmra.mxu0 %v2003
  %v2005 = vpop.f32.mrf.mxu0
  %v2006 = vadd.f32 %v1905, %v2005
  %v2007 = vpop.f32.mrf.mxu0
  %v2008 = vadd.f32 %v1907, %v2007
  %2009 = vdwg.mxu0
  %2010 = vmatprep.subr.mxu0 0.0
  %2011 = vmatpush1.msra.mxu0 0.0
  %2012 = vmatprep.subr.mxu0 0.0
  %2013 = vmatpush1.msra.mxu0 0.0
  %2014 = vmatprep.subr.mxu0 0.0
  %2015 = vmatpush1.msra.mxu0 0.0
  %2016 = vmatprep.subr.mxu0 0.0
  %2017 = vmatpush1.msra.mxu0 0.0
  %2018 = vmatprep.subr.mxu0 0.0
  %2019 = vmatpush1.msra.mxu0 0.0
  %2020 = vmatprep.subr.mxu0 0.0
  %2021 = vmatpush1.msra.mxu0 0.0
  %2022 = vmatprep.subr.mxu0 0.0
  %2023 = vmatpush1.msra.mxu0 0.0
  %2024 = vmatprep.subr.mxu0 0.0
  %2025 = vmatpush1.msra.mxu0 0.0
  %2026 = vmatprep.subr.mxu0 0.0
  %2027 = vmatpush1.msra.mxu0 0.0
  %2028 = vmatprep.subr.mxu0 0.0
  %2029 = vmatpush1.msra.mxu0 0.0
  %2030 = vmatprep.subr.mxu0 0.0
  %2031 = vmatpush1.msra.mxu0 0.0
  %2032 = vmatprep.subr.mxu0 0.0
  %2033 = vmatpush1.msra.mxu0 0.0
  %2034 = vmatprep.subr.mxu0 0.0
  %2035 = vmatpush1.msra.mxu0 0.0
  %v2036 = vand.u32 %v1072, 4294901760
  %2037 = vmatprep.subr.mxu0 %v2036
  %v2038 = vand.u32 %v1069, 4294901760
  %2039 = vmatpush1.msra.mxu0 %v2038
  %v2040 = vand.u32 %v1034, 4294901760
  %2041 = vmatprep.subr.mxu0 %v2040
  %v2042 = vand.u32 %v1033, 4294901760
  %2043 = vmatpush1.msra.mxu0 %v2042
  %v2044 = vand.u32 %v1030, 4294901760
  %2045 = vmatprep.subr.mxu0 %v2044
  %v2046 = vand.u32 %v1029, 4294901760
  %2047 = vmatpush1.msra.mxu0 %v2046
  %2048 = vmatprep.subr.mxu0 0.0
  %2049 = vmatpush2.msra.mxu0 0.0
  %2050 = vmatprep.subr.mxu0 0.0
  %2051 = vmatpush2.msra.mxu0 0.0
  %2052 = vmatprep.subr.mxu0 0.0
  %2053 = vmatpush2.msra.mxu0 0.0
  %2054 = vmatprep.subr.mxu0 0.0
  %2055 = vmatpush2.msra.mxu0 0.0
  %2056 = vmatprep.subr.mxu0 0.0
  %2057 = vmatpush2.msra.mxu0 0.0
  %2058 = vmatprep.subr.mxu0 0.0
  %2059 = vmatpush2.msra.mxu0 0.0
  %2060 = vmatprep.subr.mxu0 0.0
  %2061 = vmatpush2.msra.mxu0 0.0
  %2062 = vmatprep.subr.mxu0 0.0
  %2063 = vmatpush2.msra.mxu0 0.0
  %2064 = vmatprep.subr.mxu0 0.0
  %2065 = vmatpush2.msra.mxu0 0.0
  %2066 = vmatprep.subr.mxu0 0.0
  %2067 = vmatpush2.msra.mxu0 0.0
  %2068 = vmatprep.subr.mxu0 0.0
  %2069 = vmatpush2.msra.mxu0 0.0
  %2070 = vmatprep.subr.mxu0 0.0
  %2071 = vmatpush2.msra.mxu0 0.0
  %2072 = vmatprep.subr.mxu0 0.0
  %2073 = vmatpush2.msra.mxu0 0.0
  %2074 = vmatprep.subr.mxu0 0.0
  %2075 = vmatpush2.msra.mxu0 0.0
  %2076 = vmatprep.subr.mxu0 0.0
  %2077 = vmatpush2.msra.mxu0 0.0
  %2078 = vmatprep.subr.mxu0 0.0
  %2079 = vmatpush2.msra.mxu0 0.0
  %2080 = vmatprep.mubr.f32.mxu0 0.0
  %v2081 = vand.u32 %v1053, 4294901760
  %v2082 = vsub.f32 %v1053, %v2081
  %v2083 = vand.u32 %v2082, 4294901760
  %2084 = vmatmul.mubr.f32.gmra.mxu0 %v2083
  %v2085 = vpop.f32.mrf.mxu0
  %v2086 = vadd.f32 %v1990, %v2085
  %v2087 = vpop.f32.mrf.mxu0
  %v2088 = vadd.f32 %v1992, %v2087
  %2089 = vmatprep.mubr.f32.mxu0 0.0
  %v2090 = vand.u32 %v1056, 4294901760
  %v2091 = vsub.f32 %v1056, %v2090
  %v2092 = vand.u32 %v2091, 4294901760
  %2093 = vmatmul.mubr.f32.gmra.mxu0 %v2092
  %v2094 = vpop.f32.mrf.mxu0
  %v2095 = vadd.f32 %v1998, %v2094
  %v2096 = vpop.f32.mrf.mxu0
  %v2097 = vadd.f32 %v2000, %v2096
  %2098 = vmatprep.mubr.f32.mxu0 0.0
  %v2099 = vand.u32 %v1059, 4294901760
  %v2100 = vsub.f32 %v1059, %v2099
  %v2101 = vand.u32 %v2100, 4294901760
  %2102 = vmatmul.mubr.f32.gmra.mxu0 %v2101
  %v2103 = vpop.f32.mrf.mxu0
  %v2104 = vadd.f32 %v2006, %v2103
  %v2105 = vpop.f32.mrf.mxu0
  %v2106 = vadd.f32 %v2008, %v2105
  %2107 = vdwg.mxu0
  %2108 = vmatprep.subr.mxu0 0.0
  %2109 = vmatpush1.msra.mxu0 0.0
  %2110 = vmatprep.subr.mxu0 0.0
  %2111 = vmatpush1.msra.mxu0 0.0
  %2112 = vmatprep.subr.mxu0 0.0
  %2113 = vmatpush1.msra.mxu0 0.0
  %2114 = vmatprep.subr.mxu0 0.0
  %2115 = vmatpush1.msra.mxu0 0.0
  %2116 = vmatprep.subr.mxu0 0.0
  %2117 = vmatpush1.msra.mxu0 0.0
  %2118 = vmatprep.subr.mxu0 0.0
  %2119 = vmatpush1.msra.mxu0 0.0
  %2120 = vmatprep.subr.mxu0 0.0
  %2121 = vmatpush1.msra.mxu0 0.0
  %2122 = vmatprep.subr.mxu0 0.0
  %2123 = vmatpush1.msra.mxu0 0.0
  %2124 = vmatprep.subr.mxu0 0.0
  %2125 = vmatpush1.msra.mxu0 0.0
  %2126 = vmatprep.subr.mxu0 0.0
  %2127 = vmatpush1.msra.mxu0 0.0
  %2128 = vmatprep.subr.mxu0 0.0
  %2129 = vmatpush1.msra.mxu0 0.0
  %2130 = vmatprep.subr.mxu0 0.0
  %2131 = vmatpush1.msra.mxu0 0.0
  %2132 = vmatprep.subr.mxu0 0.0
  %2133 = vmatpush1.msra.mxu0 0.0
  %v2134 = vand.u32 %v1072, 4294901760
  %v2135 = vsub.f32 %v1072, %v2134
  %v2136 = vand.u32 %v2135, 4294901760
  %2137 = vmatprep.subr.mxu0 %v2136
  %v2138 = vand.u32 %v1069, 4294901760
  %v2139 = vsub.f32 %v1069, %v2138
  %v2140 = vand.u32 %v2139, 4294901760
  %2141 = vmatpush1.msra.mxu0 %v2140
  %v2142 = vand.u32 %v1034, 4294901760
  %v2143 = vsub.f32 %v1034, %v2142
  %v2144 = vand.u32 %v2143, 4294901760
  %2145 = vmatprep.subr.mxu0 %v2144
  %v2146 = vand.u32 %v1033, 4294901760
  %v2147 = vsub.f32 %v1033, %v2146
  %v2148 = vand.u32 %v2147, 4294901760
  %2149 = vmatpush1.msra.mxu0 %v2148
  %v2150 = vand.u32 %v1030, 4294901760
  %v2151 = vsub.f32 %v1030, %v2150
  %v2152 = vand.u32 %v2151, 4294901760
  %2153 = vmatprep.subr.mxu0 %v2152
  %v2154 = vand.u32 %v1029, 4294901760
  %v2155 = vsub.f32 %v1029, %v2154
  %v2156 = vand.u32 %v2155, 4294901760
  %2157 = vmatpush1.msra.mxu0 %v2156
  %2158 = vmatprep.subr.mxu0 0.0
  %2159 = vmatpush2.msra.mxu0 0.0
  %2160 = vmatprep.subr.mxu0 0.0
  %2161 = vmatpush2.msra.mxu0 0.0
  %2162 = vmatprep.subr.mxu0 0.0
  %2163 = vmatpush2.msra.mxu0 0.0
  %2164 = vmatprep.subr.mxu0 0.0
  %2165 = vmatpush2.msra.mxu0 0.0
  %2166 = vmatprep.subr.mxu0 0.0
  %2167 = vmatpush2.msra.mxu0 0.0
  %2168 = vmatprep.subr.mxu0 0.0
  %2169 = vmatpush2.msra.mxu0 0.0
  %2170 = vmatprep.subr.mxu0 0.0
  %2171 = vmatpush2.msra.mxu0 0.0
  %2172 = vmatprep.subr.mxu0 0.0
  %2173 = vmatpush2.msra.mxu0 0.0
  %2174 = vmatprep.subr.mxu0 0.0
  %2175 = vmatpush2.msra.mxu0 0.0
  %2176 = vmatprep.subr.mxu0 0.0
  %2177 = vmatpush2.msra.mxu0 0.0
  %2178 = vmatprep.subr.mxu0 0.0
  %2179 = vmatpush2.msra.mxu0 0.0
  %2180 = vmatprep.subr.mxu0 0.0
  %2181 = vmatpush2.msra.mxu0 0.0
  %2182 = vmatprep.subr.mxu0 0.0
  %2183 = vmatpush2.msra.mxu0 0.0
  %2184 = vmatprep.subr.mxu0 0.0
  %2185 = vmatpush2.msra.mxu0 0.0
  %2186 = vmatprep.subr.mxu0 0.0
  %2187 = vmatpush2.msra.mxu0 0.0
  %2188 = vmatprep.subr.mxu0 0.0
  %2189 = vmatpush2.msra.mxu0 0.0
  %2190 = vmatprep.mubr.f32.mxu0 0.0
  %v2191 = vand.u32 %v1053, 4294901760
  %2192 = vmatmul.mubr.f32.gmra.mxu0 %v2191
  %v2193 = vpop.f32.mrf.mxu0
  %v2194 = vadd.f32 %v2086, %v2193
  %v2195 = vpop.f32.mrf.mxu0
  %v2196 = vadd.f32 %v2088, %v2195
  %2197 = vmatprep.mubr.f32.mxu0 0.0
  %v2198 = vand.u32 %v1056, 4294901760
  %2199 = vmatmul.mubr.f32.gmra.mxu0 %v2198
  %v2200 = vpop.f32.mrf.mxu0
  %v2201 = vadd.f32 %v2095, %v2200
  %v2202 = vpop.f32.mrf.mxu0
  %v2203 = vadd.f32 %v2097, %v2202
  %2204 = vmatprep.mubr.f32.mxu0 0.0
  %v2205 = vand.u32 %v1059, 4294901760
  %2206 = vmatmul.mubr.f32.gmra.mxu0 %v2205
  %v2207 = vpop.f32.mrf.mxu0
  %v2208 = vadd.f32 %v2104, %v2207
  %v2209 = vpop.f32.mrf.mxu0
  %v2210 = vadd.f32 %v2106, %v2209
  %2211 = vdwg.mxu0
  %2212 = vmatprep.subr.mxu0 0.0
  %2213 = vmatpush1.msra.mxu0 0.0
  %2214 = vmatprep.subr.mxu0 0.0
  %2215 = vmatpush1.msra.mxu0 0.0
  %2216 = vmatprep.subr.mxu0 0.0
  %2217 = vmatpush1.msra.mxu0 0.0
  %2218 = vmatprep.subr.mxu0 0.0
  %2219 = vmatpush1.msra.mxu0 0.0
  %2220 = vmatprep.subr.mxu0 0.0
  %2221 = vmatpush1.msra.mxu0 0.0
  %2222 = vmatprep.subr.mxu0 0.0
  %2223 = vmatpush1.msra.mxu0 0.0
  %2224 = vmatprep.subr.mxu0 0.0
  %2225 = vmatpush1.msra.mxu0 0.0
  %2226 = vmatprep.subr.mxu0 0.0
  %2227 = vmatpush1.msra.mxu0 0.0
  %2228 = vmatprep.subr.mxu0 0.0
  %2229 = vmatpush1.msra.mxu0 0.0
  %2230 = vmatprep.subr.mxu0 0.0
  %2231 = vmatpush1.msra.mxu0 0.0
  %2232 = vmatprep.subr.mxu0 0.0
  %2233 = vmatpush1.msra.mxu0 0.0
  %2234 = vmatprep.subr.mxu0 0.0
  %2235 = vmatpush1.msra.mxu0 0.0
  %2236 = vmatprep.subr.mxu0 0.0
  %2237 = vmatpush1.msra.mxu0 0.0
  %v2238 = vand.u32 %v1072, 4294901760
  %2239 = vmatprep.subr.mxu0 %v2238
  %v2240 = vand.u32 %v1069, 4294901760
  %2241 = vmatpush1.msra.mxu0 %v2240
  %v2242 = vand.u32 %v1034, 4294901760
  %2243 = vmatprep.subr.mxu0 %v2242
  %v2244 = vand.u32 %v1033, 4294901760
  %2245 = vmatpush1.msra.mxu0 %v2244
  %v2246 = vand.u32 %v1030, 4294901760
  %2247 = vmatprep.subr.mxu0 %v2246
  %v2248 = vand.u32 %v1029, 4294901760
  %2249 = vmatpush1.msra.mxu0 %v2248
  %2250 = vmatprep.subr.mxu0 0.0
  %2251 = vmatpush2.msra.mxu0 0.0
  %2252 = vmatprep.subr.mxu0 0.0
  %2253 = vmatpush2.msra.mxu0 0.0
  %2254 = vmatprep.subr.mxu0 0.0
  %2255 = vmatpush2.msra.mxu0 0.0
  %2256 = vmatprep.subr.mxu0 0.0
  %2257 = vmatpush2.msra.mxu0 0.0
  %2258 = vmatprep.subr.mxu0 0.0
  %2259 = vmatpush2.msra.mxu0 0.0
  %2260 = vmatprep.subr.mxu0 0.0
  %2261 = vmatpush2.msra.mxu0 0.0
  %2262 = vmatprep.subr.mxu0 0.0
  %2263 = vmatpush2.msra.mxu0 0.0
  %2264 = vmatprep.subr.mxu0 0.0
  %2265 = vmatpush2.msra.mxu0 0.0
  %2266 = vmatprep.subr.mxu0 0.0
  %2267 = vmatpush2.msra.mxu0 0.0
  %2268 = vmatprep.subr.mxu0 0.0
  %2269 = vmatpush2.msra.mxu0 0.0
  %2270 = vmatprep.subr.mxu0 0.0
  %2271 = vmatpush2.msra.mxu0 0.0
  %2272 = vmatprep.subr.mxu0 0.0
  %2273 = vmatpush2.msra.mxu0 0.0
  %2274 = vmatprep.subr.mxu0 0.0
  %2275 = vmatpush2.msra.mxu0 0.0
  %2276 = vmatprep.subr.mxu0 0.0
  %2277 = vmatpush2.msra.mxu0 0.0
  %2278 = vmatprep.subr.mxu0 0.0
  %2279 = vmatpush2.msra.mxu0 0.0
  %2280 = vmatprep.subr.mxu0 0.0
  %2281 = vmatpush2.msra.mxu0 0.0
  %2282 = vmatprep.mubr.f32.mxu0 0.0
  %v2283 = vand.u32 %v1053, 4294901760
  %2284 = vmatmul.mubr.f32.gmra.mxu0 %v2283
  %v2285 = vpop.f32.mrf.mxu0
  %v2286 = vadd.f32 %v2194, %v2285
  %v2287 = vpop.f32.mrf.mxu0
  %v2288 = vadd.f32 %v2196, %v2287
  %2289 = vmatprep.mubr.f32.mxu0 0.0
  %v2290 = vand.u32 %v1056, 4294901760
  %2291 = vmatmul.mubr.f32.gmra.mxu0 %v2290
  %v2292 = vpop.f32.mrf.mxu0
  %v2293 = vadd.f32 %v2201, %v2292
  %v2294 = vpop.f32.mrf.mxu0
  %v2295 = vadd.f32 %v2203, %v2294
  %2296 = vmatprep.mubr.f32.mxu0 0.0
  %v2297 = vand.u32 %v1059, 4294901760
  %2298 = vmatmul.mubr.f32.gmra.mxu0 %v2297
  %v2299 = vpop.f32.mrf.mxu0
  %v2300 = vadd.f32 %v2208, %v2299
  %v2301 = vpop.f32.mrf.mxu0
  %v2302 = vadd.f32 %v2210, %v2301
  %2303 = vdwg.mxu0
  %v2304 = vadd.f32 %v1671, %v1673
  %v2305 = vadd.f32 %v2304, %v2286
  %v2306 = vadd.f32 %v2305, %v2288
  %2307 = vadd.xlane.f32.xlu0 %v2306
  %v2308 = vpop.xlane.xlu0 %2307
  %v2309 = vadd.f32 %v1678, %v1680
  %v2310 = vadd.f32 %v2309, %v2293
  %v2311 = vadd.f32 %v2310, %v2295
  %2312 = vadd.xlane.f32.xlu0 %v2311
  %v2313 = vpop.xlane.xlu0 %2312
  %v2314 = vsel %vm1061, %v1685, 0.0
  %v2315 = vsel %vm1061, %v1687, 0.0
  %v2316 = vadd.f32 %v2314, %v2315
  %v2317 = vsel %vm1061, %v2300, 0.0
  %v2318 = vadd.f32 %v2316, %v2317
  %v2319 = vsel %vm1061, %v2302, 0.0
  %v2320 = vadd.f32 %v2318, %v2319
  %2321 = vadd.xlane.f32.xlu0 %v2320
  %v2322 = vpop.xlane.xlu0 %2321
  %v2323 = vmul.f32 %v2308, 0.001953125
  %v2324 = vmul.f32 %v2313, 0.001953125
  %v2325 = vmul.f32 %v2322, 0.001953125
  %v2326 = vsub.f32 %v1671, %v2323
  %v2327 = vsub.f32 %v1673, %v2323
  %v2328 = vsub.f32 %v2286, %v2323
  %v2329 = vsub.f32 %v2288, %v2323
  %v2330 = vsub.f32 %v1678, %v2324
  %v2331 = vsub.f32 %v1680, %v2324
  %v2332 = vsub.f32 %v2293, %v2324
  %v2333 = vsub.f32 %v2295, %v2324
  %v2334 = vsub.f32 %v1685, %v2325
  %v2335 = vsub.f32 %v1687, %v2325
  %v2336 = vsub.f32 %v2300, %v2325
  %v2337 = vsub.f32 %v2302, %v2325
  %v2338 = vmul.f32 %v2326, %v2326
  %v2339 = vmul.f32 %v2327, %v2327
  %v2340 = vmul.f32 %v2328, %v2328
  %v2341 = vmul.f32 %v2329, %v2329
  %v2342 = vmul.f32 %v2330, %v2330
  %v2343 = vmul.f32 %v2331, %v2331
  %v2344 = vmul.f32 %v2332, %v2332
  %v2345 = vmul.f32 %v2333, %v2333
  %v2346 = vmul.f32 %v2334, %v2334
  %v2347 = vmul.f32 %v2335, %v2335
  %v2348 = vmul.f32 %v2336, %v2336
  %v2349 = vmul.f32 %v2337, %v2337
  %v2350 = vadd.f32 %v2338, %v2339
  %v2351 = vadd.f32 %v2350, %v2340
  %v2352 = vadd.f32 %v2351, %v2341
  %2353 = vadd.xlane.f32.xlu0 %v2352
  %v2354 = vpop.xlane.xlu0 %2353
  %v2355 = vadd.f32 %v2342, %v2343
  %v2356 = vadd.f32 %v2355, %v2344
  %v2357 = vadd.f32 %v2356, %v2345
  %2358 = vadd.xlane.f32.xlu0 %v2357
  %v2359 = vpop.xlane.xlu0 %2358
  %v2360 = vsel %vm1061, %v2346, 0.0
  %v2361 = vsel %vm1061, %v2347, 0.0
  %v2362 = vadd.f32 %v2360, %v2361
  %v2363 = vsel %vm1061, %v2348, 0.0
  %v2364 = vadd.f32 %v2362, %v2363
  %v2365 = vsel %vm1061, %v2349, 0.0
  %v2366 = vadd.f32 %v2364, %v2365
  %2367 = vadd.xlane.f32.xlu0 %v2366
  %v2368 = vpop.xlane.xlu0 %2367
  %v2369 = vmul.f32 %v2354, 0.001953125
  %v2370 = vmul.f32 %v2359, 0.001953125
  %v2371 = vmul.f32 %v2368, 0.001953125
  %v2372 = vadd.f32 %v2369, 1e-05
  %v2373 = vadd.f32 %v2370, 1e-05
  %v2374 = vadd.f32 %v2371, 1e-05
  %v2375 = vrsqrt.pop %v2372
  %v2376 = vrsqrt.pop %v2373
  %v2377 = vrsqrt.pop %v2374
  %v2378 = vld [vmem:[%s6] sm:$0xff]
  %v2379 = vld [vmem:[%s6 + $0x8] sm:$0xff]
  %v2380 = vld [vmem:[%s6 + $0x10] sm:$0xff]
  %v2381 = vld [vmem:[%s6 + $0x18] sm:$0xff]
  %v2382 = vld [vmem:[%s6 + $0x20] sm:$0xff]
  %v2383 = vld [vmem:[%s6 + $0x28] sm:$0xff]
  %v2384 = vld [vmem:[%s6 + $0x30] sm:$0xff]
  %v2385 = vld [vmem:[%s6 + $0x38] sm:$0xff]
  %v2386 = vld [vmem:[%s6 + $0x40] sm:$0x1]
  %v2387 = vld [vmem:[%s6 + $0x48] sm:$0x1]
  %v2388 = vld [vmem:[%s6 + $0x50] sm:$0x1]
  %v2389 = vld [vmem:[%s6 + $0x58] sm:$0x1]
  %v2390 = vmul.f32 %v2326, %v2375
  %v2391 = vmul.f32 %v2327, %v2375
  %v2392 = vmul.f32 %v2328, %v2375
  %v2393 = vmul.f32 %v2329, %v2375
  %v2394 = vmul.f32 %v2330, %v2376
  %v2395 = vmul.f32 %v2331, %v2376
  %v2396 = vmul.f32 %v2332, %v2376
  %v2397 = vmul.f32 %v2333, %v2376
  %v2398 = vmul.f32 %v2334, %v2377
  %v2399 = vmul.f32 %v2335, %v2377
  %v2400 = vmul.f32 %v2336, %v2377
  %v2401 = vmul.f32 %v2337, %v2377
  %v2402 = vld [vmem:[%s4] sm:$0xff]
  %v2403 = vld [vmem:[%s4 + $0x8] sm:$0xff]
  %v2404 = vld [vmem:[%s4 + $0x10] sm:$0x1]
  %2406 = vset.pattern.permute.xlu0 0
  %2407 = vperm.xlu0 %2406, %v2402
  %v2408 = vpop.permute.xlu0 %2407
  %2411 = vset.pattern.permute.xlu0 0
  %2412 = vperm.xlu0 %2411, %v2403
  %v2413 = vpop.permute.xlu0 %2412
  %2416 = vset.pattern.permute.xlu0 0
  %2417 = vperm.xlu0 %2416, %v2404
  %v2418 = vpop.permute.xlu0 %2417
  %v2420 = vmul.f32 %v2390, %v2408
  %v2421 = vmul.f32 %v2391, %v2408
  %v2422 = vmul.f32 %v2392, %v2408
  %v2423 = vmul.f32 %v2393, %v2408
  %v2424 = vmul.f32 %v2394, %v2413
  %v2425 = vmul.f32 %v2395, %v2413
  %v2426 = vmul.f32 %v2396, %v2413
  %v2427 = vmul.f32 %v2397, %v2413
  %v2428 = vmul.f32 %v2398, %v2418
  %v2429 = vmul.f32 %v2399, %v2418
  %v2430 = vmul.f32 %v2400, %v2418
  %v2431 = vmul.f32 %v2401, %v2418
  %v2432 = vadd.f32 %v2378, %v2420
  %v2433 = vadd.f32 %v2379, %v2421
  %v2434 = vadd.f32 %v2380, %v2422
  %v2435 = vadd.f32 %v2381, %v2423
  %v2436 = vadd.f32 %v2382, %v2424
  %v2437 = vadd.f32 %v2383, %v2425
  %v2438 = vadd.f32 %v2384, %v2426
  %v2439 = vadd.f32 %v2385, %v2427
  %v2440 = vadd.f32 %v2386, %v2428
  %v2441 = vadd.f32 %v2387, %v2429
  %v2442 = vadd.f32 %v2388, %v2430
  %v2443 = vadd.f32 %v2389, %v2431
  %v2444 = vld [vmem:[%s5] sm:$0xff]
  %v2445 = vld [vmem:[%s5 + $0x8] sm:$0xff]
  %v2446 = vld [vmem:[%s5 + $0x10] sm:$0x1]
  %2448 = vset.pattern.permute.xlu0 0
  %2449 = vperm.xlu0 %2448, %v2444
  %v2450 = vpop.permute.xlu0 %2449
  %2453 = vset.pattern.permute.xlu0 0
  %2454 = vperm.xlu0 %2453, %v2445
  %v2455 = vpop.permute.xlu0 %2454
  %2458 = vset.pattern.permute.xlu0 0
  %2459 = vperm.xlu0 %2458, %v2446
  %v2460 = vpop.permute.xlu0 %2459
  %v2462 = vadd.f32 %v2432, %v2450
  %v2463 = vadd.f32 %v2433, %v2450
  %v2464 = vadd.f32 %v2434, %v2450
  %v2465 = vadd.f32 %v2435, %v2450
  %v2466 = vadd.f32 %v2436, %v2455
  %v2467 = vadd.f32 %v2437, %v2455
  %v2468 = vadd.f32 %v2438, %v2455
  %v2469 = vadd.f32 %v2439, %v2455
  %v2470 = vadd.f32 %v2440, %v2460
  %v2471 = vadd.f32 %v2441, %v2460
  %v2472 = vadd.f32 %v2442, %v2460
  %v2473 = vadd.f32 %v2443, %v2460
  %v2474 = vmax.f32 %v2462, 0.0
  %v2475 = vmax.f32 %v2463, 0.0
  %v2476 = vmax.f32 %v2464, 0.0
  %v2477 = vmax.f32 %v2465, 0.0
  %v2478 = vmax.f32 %v2466, 0.0
  %v2479 = vmax.f32 %v2467, 0.0
  %v2480 = vmax.f32 %v2468, 0.0
  %v2481 = vmax.f32 %v2469, 0.0
  %v2482 = vmax.f32 %v2470, 0.0
  %v2483 = vmax.f32 %v2471, 0.0
  %v2484 = vmax.f32 %v2472, 0.0
  %v2485 = vmax.f32 %v2473, 0.0
  %2486 = vst [vmem:[%s6] sm:$0xff] %v2474
  %2487 = vst [vmem:[%s6 + $0x8] sm:$0xff] %v2475
  %2488 = vst [vmem:[%s6 + $0x10] sm:$0xff] %v2476
  %2489 = vst [vmem:[%s6 + $0x18] sm:$0xff] %v2477
  %2490 = vst [vmem:[%s6 + $0x20] sm:$0xff] %v2478
  %2491 = vst [vmem:[%s6 + $0x28] sm:$0xff] %v2479
  %2492 = vst [vmem:[%s6 + $0x30] sm:$0xff] %v2480
  %2493 = vst [vmem:[%s6 + $0x38] sm:$0xff] %v2481
  %2494 = vst [vmem:[%s6 + $0x40] sm:$0x1] %v2482
  %2495 = vst [vmem:[%s6 + $0x48] sm:$0x1] %v2483
  %2496 = vst [vmem:[%s6 + $0x50] sm:$0x1] %v2484
  %2497 = vst [vmem:[%s6 + $0x58] sm:$0x1] %v2485
  // Predicated region
  $region26: #{forward.1} parent=0 // pred_check
    _
  $region27: #{forward.1} parent=0 // pred_check_branch
    %2499 = sbr.rel (0) target = $region29
  $region28: #{forward.1} parent=0 // pred_region
    _
  $region29: #{forward.1} parent=0 // pred_fallthru
    _
  // Predicated region
  $region30: #{forward.1} parent=0 // pred_check
    _
  $region31: #{forward.1} parent=0 // pred_check_branch
    %2501 = sbr.rel (0) target = $region33
  $region32: #{forward.1} parent=0 // pred_region
    _
  $region33: #{forward.1} parent=0 // pred_fallthru
    _

</llo_original>
